<compile_context>
chip_gen: v5e
topology: v5e:2x2
jax: 0.10.0
libtpu: 0.0.40
codegen_flags: <defaults>
</compile_context>

<pallas_src>
import jax
import jax.numpy as jnp
from jax import lax
from jax.experimental import pallas as pl
from jax.experimental.pallas import tpu as pltpu

# Model hyperparameters (GMVAEFC_DEEP defaults)
N = 16
INPUT_DIM = N * N          # 256
HIDDEN = 100               # true hidden width (padded to 128 per component)
Z_DIM = 2
K = 2
KZ = K * Z_DIM             # 4
BATCH = 8
TRUNK = 256                # fused trunk lane width: [qy block 0:128 | qz block 128:256]
SMALL = 128                # head / small-output / per-component decoder lane width

# Column layout of the packed "small" output (one lane-dense (B, SMALL) store)
C_LOGIT = 0                # [0, 2)   qy_logit
C_QY = K                   # [2, 4)   qy (softmax)
C_Z = 2 * K                # [4, 8)   z
C_ZM = C_Z + KZ            # [8, 12)  zm
C_ZV = C_ZM + KZ           # [12, 16) zv (softplus)

LINEAR_NAMES = ("qy1", "qy11", "qy2", "qy3", "qz1", "qz2", "qz22",
                "qz3", "qz4", "d1", "d2", "d3")


def gmvae_kernel(x_ref, eps_ref, b_ref,
                 wt_hbm, wh_hbm, w1_hbm, w2_hbm, w3_hbm,
                 small_ref, px_ref,
                 wt_s, wh_s, w1_s, w2_s, w3_s, sem):
    """Whole forward in one invocation (no grid; everything fits in VMEM)."""
    f32 = jnp.float32
    bf16 = jnp.bfloat16

    # Issue every weight DMA up front; wait just-in-time before first use so
    # later-layer weight transfers hide under earlier-layer compute.
    copies = [
        pltpu.make_async_copy(wt_hbm.at[0], wt_s.at[0], sem.at[0]),
        pltpu.make_async_copy(wt_hbm.at[1], wt_s.at[1], sem.at[1]),
        pltpu.make_async_copy(wt_hbm.at[2], wt_s.at[2], sem.at[2]),
        pltpu.make_async_copy(wh_hbm, wh_s, sem.at[3]),
        pltpu.make_async_copy(w1_hbm, w1_s, sem.at[4]),
        pltpu.make_async_copy(w2_hbm, w2_s, sem.at[5]),
        pltpu.make_async_copy(w3_hbm, w3_s, sem.at[6]),
    ]
    for c in copies:
        c.start()

    def mm(h, w, b):
        # bf16 x bf16 MXU pass with f32 accumulation.
        return jnp.dot(h.astype(bf16), w, preferred_element_type=f32) + b

    relu = lambda v: jnp.maximum(v, 0.0)

    # Fused qy|qz trunk: 3 block-diagonal ReLU layers, then fused heads.
    x = x_ref[...]
    copies[0].wait()
    h = relu(mm(x, wt_s[0], b_ref[0:1, :]))
    copies[1].wait()
    h = relu(mm(h, wt_s[1], b_ref[1:2, :]))
    copies[2].wait()
    h = relu(mm(h, wt_s[2], b_ref[2:3, :]))
    copies[3].wait()
    head = mm(h, wh_s[...], b_ref[3:4, 0:SMALL])   # lanes 0:2 logits, 8:12 zm, 12:16 zv_raw

    lanes = lax.broadcasted_iota(jnp.int32, head.shape, 1)
    mask_logit = lanes < C_LOGIT + K
    mask_zm = (lanes >= C_ZM) & (lanes < C_ZM + KZ)
    mask_zv = (lanes >= C_ZV) & (lanes < C_ZV + KZ)

    # Softmax over the K logit lanes only (masked, full-width, exact divide).
    logit_m = jnp.where(mask_logit, head, -1e30)
    m = jnp.max(logit_m, axis=1, keepdims=True)
    e = jnp.exp(logit_m - m)                       # exactly 0 off the logit lanes
    qy_full = e / jnp.sum(e, axis=1, keepdims=True)

    # Stable softplus: max(x,0) + log1p(exp(-|x|)).
    sp = jnp.maximum(head, 0.0) + jnp.log1p(jnp.exp(-jnp.abs(head)))
    zv_full = jnp.where(mask_zv, sp, 0.0)          # lanes 12:16
    zm_full = jnp.where(mask_zm, head, 0.0)        # lanes 8:12

    # Reparameterize at the z lanes (4:8): z = eps * sqrt(zv) + zm.
    zv_at_z = pltpu.roll(zv_full, shift=SMALL - (C_ZV - C_Z), axis=1)
    zm_at_z = pltpu.roll(zm_full, shift=SMALL - (C_ZM - C_Z), axis=1)
    z_full = eps_ref[...] * jnp.sqrt(zv_at_z) + zm_at_z   # nonzero only at 4:8

    # Single lane-dense store of all small outputs.
    small_ref[...] = (jnp.where(mask_logit, head, 0.0)
                      + pltpu.roll(qy_full, shift=C_QY - C_LOGIT, axis=1)
                      + z_full + zm_full + zv_full)

    # Decoder. decode1 maps the z lanes of each component into its own 128-lane
    # hidden slice; decode2/decode3 then reuse the SAME un-padded resident
    # weights for both components (two lane slices, one weight DMA/push).
    copies[4].wait()
    hd = jnp.tanh(mm(z_full, w1_s[...], b_ref[4:5, :]))        # (B, K*128)
    comp = [hd[:, i * SMALL:(i + 1) * SMALL] for i in range(K)]
    copies[5].wait()
    b2 = b_ref[5:6, 0:SMALL]
    comp = [jnp.tanh(mm(c, w2_s[...], b2)) for c in comp]
    copies[6].wait()
    b3 = b_ref[6:7, :]
    for i, c in enumerate(comp):
        px_ref[:, i * INPUT_DIM:(i + 1) * INPUT_DIM] = jnp.tanh(mm(c, w3_s[...], b3))


def init_params(key):
    """Deterministic synthetic parameter init (shapes from __init__)."""
    scale = 0.05
    keys = jax.random.split(key, 16)

    def lin(k, fan_in, fan_out):
        kw, kb = jax.random.split(k)
        w = jax.random.normal(kw, (fan_in, fan_out), jnp.float32) * scale
        b = jax.random.normal(kb, (1, fan_out), jnp.float32) * scale
        return (w, b)

    return {
        "qy1":  lin(keys[0], INPUT_DIM, HIDDEN),
        "qy11": lin(keys[1], HIDDEN, HIDDEN),
        "qy2":  lin(keys[2], HIDDEN, HIDDEN),
        "qy3":  lin(keys[3], HIDDEN, K),
        "qz1":  lin(keys[4], INPUT_DIM, HIDDEN),
        "qz2":  lin(keys[5], HIDDEN, HIDDEN),
        "qz22": lin(keys[6], HIDDEN, HIDDEN),
        "qz3":  lin(keys[7], HIDDEN, KZ),
        "qz4":  lin(keys[8], HIDDEN, KZ),
        "d1":   lin(keys[9], Z_DIM, HIDDEN),
        "d2":   lin(keys[10], HIDDEN, HIDDEN),
        "d3":   lin(keys[11], HIDDEN, INPUT_DIM),
        "zm_graph": jax.random.normal(keys[12], (K, Z_DIM), jnp.float32),
        "zv_graph": jax.random.normal(keys[13], (K, Z_DIM), jnp.float32),
    }


def quantize_weights_bf16(params):
    """Round Linear weights to bf16 (the dtype the kernel streams from HBM) so
    the f32 reference uses numerically identical weight values."""
    q = dict(params)
    for name in LINEAR_NAMES:
        w, b = params[name]
        q[name] = (w.astype(jnp.bfloat16).astype(jnp.float32), b)
    return q


def pack_params(params):
    """Pack the 12 nn.Linear layers into 5 de-padded bf16 weight tiles plus one
    small f32 bias table.  Runs ONCE outside the jitted per-call path.

      w_trunk (3,256,256): fused [qy|qz] trunk ([qy1|qz1],[qy1_1|qz2],[qy2|qz2_2])
      w_head  (256,128)  : qy3 -> lanes 0:2, qz3 -> 8:12, qz4 -> 12:16
      w_d1    (128,256)  : decode1, z lanes 4+2i:6+2i -> cols i*128 : i*128+100
      w_d2    (128,128)  : decode2 (shared by both mixture components)
      w_d3    (128,256)  : decode3 (shared)
      b_all   (8,256) f32: rows 0-2 trunk, 3 head, 4 d1(block), 5 d2, 6 d3
    """
    H = HIDDEN

    def wb(name):
        w, b = params[name]
        return jnp.asarray(w, jnp.float32), jnp.asarray(b, jnp.float32).reshape(-1)

    qy1_w, qy1_b = wb("qy1");   qy11_w, qy11_b = wb("qy11")
    qy2_w, qy2_b = wb("qy2");   qy3_w, qy3_b = wb("qy3")
    qz1_w, qz1_b = wb("qz1");   qz2_w, qz2_b = wb("qz2")
    qz22_w, qz22_b = wb("qz22"); qz3_w, qz3_b = wb("qz3")
    qz4_w, qz4_b = wb("qz4")
    d1_w, d1_b = wb("d1"); d2_w, d2_b = wb("d2"); d3_w, d3_b = wb("d3")

    w_trunk = jnp.zeros((3, TRUNK, TRUNK), jnp.float32)
    w_head = jnp.zeros((TRUNK, SMALL), jnp.float32)
    w_d1 = jnp.zeros((SMALL, K * SMALL), jnp.float32)
    w_d2 = jnp.zeros((SMALL, SMALL), jnp.float32)
    w_d3 = jnp.zeros((SMALL, INPUT_DIM), jnp.float32)
    b_all = jnp.zeros((8, TRUNK), jnp.float32)

    # Trunk layer 0: x -> [h_qy | h_qz]
    w_trunk = (w_trunk.at[0, :, 0:H].set(qy1_w)
                        .at[0, :, SMALL:SMALL + H].set(qz1_w))
    b_all = b_all.at[0, 0:H].set(qy1_b).at[0, SMALL:SMALL + H].set(qz1_b)
    # Trunk layers 1, 2: block-diagonal.
    w_trunk = (w_trunk.at[1, 0:H, 0:H].set(qy11_w)
                        .at[1, SMALL:SMALL + H, SMALL:SMALL + H].set(qz2_w))
    b_all = b_all.at[1, 0:H].set(qy11_b).at[1, SMALL:SMALL + H].set(qz2_b)
    w_trunk = (w_trunk.at[2, 0:H, 0:H].set(qy2_w)
                        .at[2, SMALL:SMALL + H, SMALL:SMALL + H].set(qz22_w))
    b_all = b_all.at[2, 0:H].set(qy2_b).at[2, SMALL:SMALL + H].set(qz22_b)
    # Fused heads (256 -> 128 lanes only; the small outputs live in lanes 0:16).
    w_head = (w_head.at[0:H, C_LOGIT:C_LOGIT + K].set(qy3_w)
                    .at[SMALL:SMALL + H, C_ZM:C_ZM + KZ].set(qz3_w)
                    .at[SMALL:SMALL + H, C_ZV:C_ZV + KZ].set(qz4_w))
    b_all = (b_all.at[3, C_LOGIT:C_LOGIT + K].set(qy3_b)
                  .at[3, C_ZM:C_ZM + KZ].set(qz3_b)
                  .at[3, C_ZV:C_ZV + KZ].set(qz4_b))
    # decode1: component i reads z lanes C_Z + i*Z_DIM.
    for i in range(K):
        r = C_Z + i * Z_DIM
        c = i * SMALL
        w_d1 = w_d1.at[r:r + Z_DIM, c:c + H].set(d1_w)
        b_all = b_all.at[4, c:c + H].set(d1_b)
    # decode2 / decode3: shared, un-padded.
    w_d2 = w_d2.at[0:H, 0:H].set(d2_w)
    b_all = b_all.at[5, 0:H].set(d2_b)
    w_d3 = w_d3.at[0:H, :].set(d3_w)
    b_all = b_all.at[6, :].set(d3_b)

    bf16 = jnp.bfloat16
    return (w_trunk.astype(bf16), w_head.astype(bf16), w_d1.astype(bf16),
            w_d2.astype(bf16), w_d3.astype(bf16), b_all)


@jax.jit
def gmvae_forward(x, eps, w_trunk, w_head, w_d1, w_d2, w_d3, b_all,
                  zm_graph, zv_graph):
    B = x.shape[0]
    x2 = x.reshape(B, INPUT_DIM).astype(jnp.float32)
    # eps padded to the packed z lanes so the kernel never lane-slices it.
    eps_pad = jnp.zeros((B, SMALL), jnp.float32).at[:, C_Z:C_Z + KZ].set(
        eps.reshape(B, KZ).astype(jnp.float32))

    vmem = pl.BlockSpec(memory_space=pltpu.MemorySpace.VMEM)
    hbm = pl.BlockSpec(memory_space=pl.ANY)   # weights stay in HBM; manual DMA

    weight_bytes = sum(int(w.size) * w.dtype.itemsize
                       for w in (w_trunk, w_head, w_d1, w_d2, w_d3, b_all))
    flops = 2 * B * (3 * TRUNK * TRUNK + TRUNK * SMALL + SMALL * K * SMALL
                     + K * SMALL * SMALL + K * SMALL * INPUT_DIM)
    io_bytes = weight_bytes + 4 * B * (INPUT_DIM + 2 * SMALL + K * INPUT_DIM)

    # Note: for large batches, add a grid over row blocks with
    # dimension_semantics=("parallel",) so v7x's second TensorCore is used.
    small, px_packed = pl.pallas_call(
        gmvae_kernel,
        out_shape=(jax.ShapeDtypeStruct((B, SMALL), jnp.float32),
                   jax.ShapeDtypeStruct((B, K * INPUT_DIM), jnp.float32)),
        in_specs=[vmem, vmem, vmem, hbm, hbm, hbm, hbm, hbm],
        out_specs=(vmem, vmem),
        scratch_shapes=[
            pltpu.VMEM((3, TRUNK, TRUNK), jnp.bfloat16),   # trunk weights
            pltpu.VMEM((TRUNK, SMALL), jnp.bfloat16),      # head weights
            pltpu.VMEM((SMALL, K * SMALL), jnp.bfloat16),  # decode1
            pltpu.VMEM((SMALL, SMALL), jnp.bfloat16),      # decode2 (shared)
            pltpu.VMEM((SMALL, INPUT_DIM), jnp.bfloat16),  # decode3 (shared)
            pltpu.SemaphoreType.DMA((7,)),
        ],
        cost_estimate=pl.CostEstimate(flops=flops,
                                      transcendentals=16 * B * SMALL,
                                      bytes_accessed=io_bytes),
    )(x2, eps_pad, b_all, w_trunk, w_head, w_d1, w_d2, w_d3)

    qy_logit = small[:, C_LOGIT:C_LOGIT + K]
    qy = small[:, C_QY:C_QY + K]
    z = small[:, C_Z:C_Z + KZ].reshape(B, K, Z_DIM)
    zm = small[:, C_ZM:C_ZM + KZ].reshape(B, K, Z_DIM)
    zv = small[:, C_ZV:C_ZV + KZ].reshape(B, K, Z_DIM)
    px = px_packed.reshape(B, K, INPUT_DIM)

    # px_graph: trivial broadcast of learned prior params (glue, not hot path)
    sp = lambda v: jnp.maximum(v, 0.0) + jnp.log1p(jnp.exp(-jnp.abs(v)))
    zm_p = jnp.broadcast_to(zm_graph, (B, K, Z_DIM))
    zv_p = jnp.broadcast_to(sp(zv_graph), (B, K, Z_DIM))
    return px, z, zm, zv, zm_p, zv_p, qy, qy_logit


def gmvae_forward_ref(x, eps, params):
    """Pure-JAX reference with identical semantics (for correctness check)."""
    B = x.shape[0]
    x2 = x.reshape(B, INPUT_DIM)
    lin = lambda h, p: h @ p[0] + p[1]
    relu = lambda v: jnp.maximum(v, 0.0)
    sp = lambda v: jnp.maximum(v, 0.0) + jnp.log1p(jnp.exp(-jnp.abs(v)))

    h = relu(lin(x2, params["qy1"]))
    h = relu(lin(h, params["qy11"]))
    h = relu(lin(h, params["qy2"]))
    qy_logit = lin(h, params["qy3"])
    qy = jax.nn.softmax(qy_logit, axis=1)

    h = relu(lin(x2, params["qz1"]))
    h = relu(lin(h, params["qz2"]))
    h = relu(lin(h, params["qz22"]))
    zm = lin(h, params["qz3"])
    zv = sp(lin(h, params["qz4"]))
    z = eps * jnp.sqrt(zv) + zm

    zr = z.reshape(B * K, Z_DIM)
    h3 = jnp.tanh(lin(zr, params["d1"]))
    h3 = jnp.tanh(lin(h3, params["d2"]))
    px = jnp.tanh(lin(h3, params["d3"])).reshape(B, K, INPUT_DIM)

    zm_p = jnp.broadcast_to(params["zm_graph"], (B, K, Z_DIM))
    zv_p = jnp.broadcast_to(sp(params["zv_graph"]), (B, K, Z_DIM))
    return (px, z.reshape(B, K, Z_DIM), zm.reshape(B, K, Z_DIM),
            zv.reshape(B, K, Z_DIM), zm_p, zv_p, qy, qy_logit)


if __name__ == "__main__":
    key = jax.random.PRNGKey(0)
    kx, keps, kp = jax.random.split(key, 3)
    x = jax.random.normal(kx, (BATCH, 1, N, N), jnp.float32)
    # TODO(synk): torch.randn_like inside reparameterize has no in-module seed;
    # eps is generated deterministically here and passed into the kernel.
    eps = jax.random.normal(keps, (BATCH, KZ), jnp.float32)

    # bf16-round the Linear weights once so kernel and reference use the same
    # weight values (the kernel streams them as bf16 from HBM).
    params = quantize_weights_bf16(init_params(kp))
    w_trunk, w_head, w_d1, w_d2, w_d3, b_all = pack_params(params)

    outs = gmvae_forward(x, eps, w_trunk, w_head, w_d1, w_d2, w_d3, b_all,
                         params["zm_graph"], params["zv_graph"])
    outs = jax.block_until_ready(outs)

    refs = gmvae_forward_ref(x, eps, params)
    names = ["px", "z", "zm", "zv", "zm_p", "zv_p", "qy", "qy_logit"]
    for name, o, r in zip(names, outs, refs):
        assert o.shape == r.shape, (name, o.shape, r.shape)
        assert bool(jnp.all(jnp.isfinite(o))), name
        # Tolerance covers bf16 activation rounding in the MXU passes (weights
        # are identically bf16-rounded on both sides).
        assert bool(jnp.allclose(o, r, atol=1e-2, rtol=1e-2)), (
            name, float(jnp.max(jnp.abs(o - r))))

    print("KERNEL_OK")
</pallas_src>

<mosaic_0001>
module attributes {stable_mosaic.version = 11 : i64} {
  func.func @gmvae_kernel(%arg0: memref<8x256xf32, #tpu.memory_space<vmem>>, %arg1: memref<8x128xf32, #tpu.memory_space<vmem>>, %arg2: memref<8x256xf32, #tpu.memory_space<vmem>>, %arg3: memref<3x256x256xbf16, #tpu.memory_space<any>>, %arg4: memref<256x128xbf16, #tpu.memory_space<any>>, %arg5: memref<128x256xbf16, #tpu.memory_space<any>>, %arg6: memref<128x128xbf16, #tpu.memory_space<any>>, %arg7: memref<128x256xbf16, #tpu.memory_space<any>>, %arg8: memref<8x128xf32, #tpu.memory_space<vmem>>, %arg9: memref<8x512xf32, #tpu.memory_space<vmem>>, %arg10: memref<3x256x256xbf16, #tpu.memory_space<vmem>>, %arg11: memref<256x128xbf16, #tpu.memory_space<vmem>>, %arg12: memref<128x256xbf16, #tpu.memory_space<vmem>>, %arg13: memref<128x128xbf16, #tpu.memory_space<vmem>>, %arg14: memref<128x256xbf16, #tpu.memory_space<vmem>>, %arg15: memref<7x!tpu.dma_semaphore, #tpu.memory_space<semaphore_mem>>) attributes {dimension_semantics = [], scalar_prefetch = 0 : i64, scratch_operands = 6 : i64, tpu.core_type = #tpu.core_type<tc>} {
    %c0_i32 = arith.constant 0 : i32
    %c0_i32_0 = arith.constant 0 : i32
    %c0_i32_1 = arith.constant 0 : i32
    %c0_i32_2 = arith.constant 0 : i32
    %c0_i32_3 = arith.constant 0 : i32
    %0 = tpu.memref_slice %arg3[%c0_i32, %c0_i32_2, %c0_i32_3] : memref<3x256x256xbf16, #tpu.memory_space<any>> -> memref<1x256x256xbf16, #tpu.memory_space<any>>
    %1 = tpu.memref_squeeze %0 : memref<1x256x256xbf16, #tpu.memory_space<any>> -> memref<256x256xbf16, #tpu.memory_space<any>>
    %c0_i32_4 = arith.constant 0 : i32
    %c0_i32_5 = arith.constant 0 : i32
    %2 = tpu.memref_slice %arg10[%c0_i32_0, %c0_i32_4, %c0_i32_5] : memref<3x256x256xbf16, #tpu.memory_space<vmem>> -> memref<1x256x256xbf16, #tpu.memory_space<vmem>>
    %3 = tpu.memref_squeeze %2 : memref<1x256x256xbf16, #tpu.memory_space<vmem>> -> memref<256x256xbf16, #tpu.memory_space<vmem>>
    %4 = tpu.memref_slice %arg15[%c0_i32_1] : memref<7x!tpu.dma_semaphore, #tpu.memory_space<semaphore_mem>> -> memref<1x!tpu.dma_semaphore, #tpu.memory_space<semaphore_mem>>
    %5 = tpu.memref_squeeze %4 : memref<1x!tpu.dma_semaphore, #tpu.memory_space<semaphore_mem>> -> memref<!tpu.dma_semaphore, #tpu.memory_space<semaphore_mem>>
    tpu.enqueue_dma source(%1 : memref<256x256xbf16, #tpu.memory_space<any>>) target(%3 : memref<256x256xbf16, #tpu.memory_space<vmem>>) target_semaphore(%5 : memref<!tpu.dma_semaphore, #tpu.memory_space<semaphore_mem>>)
    %c1_i32 = arith.constant 1 : i32
    %c1_i32_6 = arith.constant 1 : i32
    %c1_i32_7 = arith.constant 1 : i32
    %c0_i32_8 = arith.constant 0 : i32
    %c0_i32_9 = arith.constant 0 : i32
    %6 = tpu.memref_slice %arg3[%c1_i32, %c0_i32_8, %c0_i32_9] : memref<3x256x256xbf16, #tpu.memory_space<any>> -> memref<1x256x256xbf16, #tpu.memory_space<any>>
    %7 = tpu.memref_squeeze %6 : memref<1x256x256xbf16, #tpu.memory_space<any>> -> memref<256x256xbf16, #tpu.memory_space<any>>
    %c0_i32_10 = arith.constant 0 : i32
    %c0_i32_11 = arith.constant 0 : i32
    %8 = tpu.memref_slice %arg10[%c1_i32_6, %c0_i32_10, %c0_i32_11] : memref<3x256x256xbf16, #tpu.memory_space<vmem>> -> memref<1x256x256xbf16, #tpu.memory_space<vmem>>
    %9 = tpu.memref_squeeze %8 : memref<1x256x256xbf16, #tpu.memory_space<vmem>> -> memref<256x256xbf16, #tpu.memory_space<vmem>>
    %10 = tpu.memref_slice %arg15[%c1_i32_7] : memref<7x!tpu.dma_semaphore, #tpu.memory_space<semaphore_mem>> -> memref<1x!tpu.dma_semaphore, #tpu.memory_space<semaphore_mem>>
    %11 = tpu.memref_squeeze %10 : memref<1x!tpu.dma_semaphore, #tpu.memory_space<semaphore_mem>> -> memref<!tpu.dma_semaphore, #tpu.memory_space<semaphore_mem>>
    tpu.enqueue_dma source(%7 : memref<256x256xbf16, #tpu.memory_space<any>>) target(%9 : memref<256x256xbf16, #tpu.memory_space<vmem>>) target_semaphore(%11 : memref<!tpu.dma_semaphore, #tpu.memory_space<semaphore_mem>>)
    %c2_i32 = arith.constant 2 : i32
    %c2_i32_12 = arith.constant 2 : i32
    %c2_i32_13 = arith.constant 2 : i32
    %c0_i32_14 = arith.constant 0 : i32
    %c0_i32_15 = arith.constant 0 : i32
    %12 = tpu.memref_slice %arg3[%c2_i32, %c0_i32_14, %c0_i32_15] : memref<3x256x256xbf16, #tpu.memory_space<any>> -> memref<1x256x256xbf16, #tpu.memory_space<any>>
    %13 = tpu.memref_squeeze %12 : memref<1x256x256xbf16, #tpu.memory_space<any>> -> memref<256x256xbf16, #tpu.memory_space<any>>
    %c0_i32_16 = arith.constant 0 : i32
    %c0_i32_17 = arith.constant 0 : i32
    %14 = tpu.memref_slice %arg10[%c2_i32_12, %c0_i32_16, %c0_i32_17] : memref<3x256x256xbf16, #tpu.memory_space<vmem>> -> memref<1x256x256xbf16, #tpu.memory_space<vmem>>
    %15 = tpu.memref_squeeze %14 : memref<1x256x256xbf16, #tpu.memory_space<vmem>> -> memref<256x256xbf16, #tpu.memory_space<vmem>>
    %16 = tpu.memref_slice %arg15[%c2_i32_13] : memref<7x!tpu.dma_semaphore, #tpu.memory_space<semaphore_mem>> -> memref<1x!tpu.dma_semaphore, #tpu.memory_space<semaphore_mem>>
    %17 = tpu.memref_squeeze %16 : memref<1x!tpu.dma_semaphore, #tpu.memory_space<semaphore_mem>> -> memref<!tpu.dma_semaphore, #tpu.memory_space<semaphore_mem>>
    tpu.enqueue_dma source(%13 : memref<256x256xbf16, #tpu.memory_space<any>>) target(%15 : memref<256x256xbf16, #tpu.memory_space<vmem>>) target_semaphore(%17 : memref<!tpu.dma_semaphore, #tpu.memory_space<semaphore_mem>>)
    %c3_i32 = arith.constant 3 : i32
    %18 = tpu.memref_slice %arg15[%c3_i32] : memref<7x!tpu.dma_semaphore, #tpu.memory_space<semaphore_mem>> -> memref<1x!tpu.dma_semaphore, #tpu.memory_space<semaphore_mem>>
    %19 = tpu.memref_squeeze %18 : memref<1x!tpu.dma_semaphore, #tpu.memory_space<semaphore_mem>> -> memref<!tpu.dma_semaphore, #tpu.memory_space<semaphore_mem>>
    tpu.enqueue_dma source(%arg4 : memref<256x128xbf16, #tpu.memory_space<any>>) target(%arg11 : memref<256x128xbf16, #tpu.memory_space<vmem>>) target_semaphore(%19 : memref<!tpu.dma_semaphore, #tpu.memory_space<semaphore_mem>>)
    %c4_i32 = arith.constant 4 : i32
    %20 = tpu.memref_slice %arg15[%c4_i32] : memref<7x!tpu.dma_semaphore, #tpu.memory_space<semaphore_mem>> -> memref<1x!tpu.dma_semaphore, #tpu.memory_space<semaphore_mem>>
    %21 = tpu.memref_squeeze %20 : memref<1x!tpu.dma_semaphore, #tpu.memory_space<semaphore_mem>> -> memref<!tpu.dma_semaphore, #tpu.memory_space<semaphore_mem>>
    tpu.enqueue_dma source(%arg5 : memref<128x256xbf16, #tpu.memory_space<any>>) target(%arg12 : memref<128x256xbf16, #tpu.memory_space<vmem>>) target_semaphore(%21 : memref<!tpu.dma_semaphore, #tpu.memory_space<semaphore_mem>>)
    %c5_i32 = arith.constant 5 : i32
    %22 = tpu.memref_slice %arg15[%c5_i32] : memref<7x!tpu.dma_semaphore, #tpu.memory_space<semaphore_mem>> -> memref<1x!tpu.dma_semaphore, #tpu.memory_space<semaphore_mem>>
    %23 = tpu.memref_squeeze %22 : memref<1x!tpu.dma_semaphore, #tpu.memory_space<semaphore_mem>> -> memref<!tpu.dma_semaphore, #tpu.memory_space<semaphore_mem>>
    tpu.enqueue_dma source(%arg6 : memref<128x128xbf16, #tpu.memory_space<any>>) target(%arg13 : memref<128x128xbf16, #tpu.memory_space<vmem>>) target_semaphore(%23 : memref<!tpu.dma_semaphore, #tpu.memory_space<semaphore_mem>>)
    %c6_i32 = arith.constant 6 : i32
    %24 = tpu.memref_slice %arg15[%c6_i32] : memref<7x!tpu.dma_semaphore, #tpu.memory_space<semaphore_mem>> -> memref<1x!tpu.dma_semaphore, #tpu.memory_space<semaphore_mem>>
    %25 = tpu.memref_squeeze %24 : memref<1x!tpu.dma_semaphore, #tpu.memory_space<semaphore_mem>> -> memref<!tpu.dma_semaphore, #tpu.memory_space<semaphore_mem>>
    tpu.enqueue_dma source(%arg7 : memref<128x256xbf16, #tpu.memory_space<any>>) target(%arg14 : memref<128x256xbf16, #tpu.memory_space<vmem>>) target_semaphore(%25 : memref<!tpu.dma_semaphore, #tpu.memory_space<semaphore_mem>>)
    %c0 = arith.constant 0 : index
    %c0_18 = arith.constant 0 : index
    %26 = vector.load %arg0[%c0, %c0_18] : memref<8x256xf32, #tpu.memory_space<vmem>>, vector<8x256xf32>
    %c0_i32_19 = arith.constant 0 : i32
    %c0_i32_20 = arith.constant 0 : i32
    %c0_i32_21 = arith.constant 0 : i32
    %c0_i32_22 = arith.constant 0 : i32
    %c0_i32_23 = arith.constant 0 : i32
    %27 = tpu.memref_slice %arg3[%c0_i32_19, %c0_i32_22, %c0_i32_23] : memref<3x256x256xbf16, #tpu.memory_space<any>> -> memref<1x256x256xbf16, #tpu.memory_space<any>>
    %28 = tpu.memref_squeeze %27 : memref<1x256x256xbf16, #tpu.memory_space<any>> -> memref<256x256xbf16, #tpu.memory_space<any>>
    %c0_i32_24 = arith.constant 0 : i32
    %c0_i32_25 = arith.constant 0 : i32
    %29 = tpu.memref_slice %arg10[%c0_i32_20, %c0_i32_24, %c0_i32_25] : memref<3x256x256xbf16, #tpu.memory_space<vmem>> -> memref<1x256x256xbf16, #tpu.memory_space<vmem>>
    %30 = tpu.memref_squeeze %29 : memref<1x256x256xbf16, #tpu.memory_space<vmem>> -> memref<256x256xbf16, #tpu.memory_space<vmem>>
    %31 = tpu.memref_slice %arg15[%c0_i32_21] : memref<7x!tpu.dma_semaphore, #tpu.memory_space<semaphore_mem>> -> memref<1x!tpu.dma_semaphore, #tpu.memory_space<semaphore_mem>>
    %32 = tpu.memref_squeeze %31 : memref<1x!tpu.dma_semaphore, #tpu.memory_space<semaphore_mem>> -> memref<!tpu.dma_semaphore, #tpu.memory_space<semaphore_mem>>
    tpu.wait_dma2 semaphore(%32 : memref<!tpu.dma_semaphore, #tpu.memory_space<semaphore_mem>>) src(%28 : memref<256x256xbf16, #tpu.memory_space<any>>) dst(%30 : memref<256x256xbf16, #tpu.memory_space<vmem>>)
    %c0_26 = arith.constant 0 : index
    %c0_27 = arith.constant 0 : index
    %c0_28 = arith.constant 0 : index
    %33 = vector.load %arg10[%c0_26, %c0_27, %c0_28] : memref<3x256x256xbf16, #tpu.memory_space<vmem>>, vector<1x256x256xbf16>
    %34 = vector.shape_cast %33 : vector<1x256x256xbf16> to vector<256x256xbf16>
    %c0_29 = arith.constant 0 : index
    %c0_30 = arith.constant 0 : index
    %35 = vector.load %arg2[%c0_29, %c0_30] : memref<8x256xf32, #tpu.memory_space<vmem>>, vector<1x256xf32>
    %36 = arith.truncf %26 : vector<8x256xf32> to vector<8x256xbf16>
    %cst = arith.constant dense<0.000000e+00> : vector<8x256xf32>
    %37 = tpu.matmul %36, %34, %cst {dimension_numbers = #tpu.dot_dimension_numbers<[1], [0], [0], [1], [0, 0, 1, 1], [], []>} : vector<8x256xbf16>, vector<256x256xbf16>, vector<8x256xf32> -> vector<8x256xf32>
    %38 = vector.broadcast %35 : vector<1x256xf32> to vector<8x256xf32>
    %39 = arith.addf %37, %38 : vector<8x256xf32>
    %cst_31 = arith.constant 0.000000e+00 : f32
    %40 = vector.broadcast %cst_31 : f32 to vector<8x256xf32>
    %41 = arith.maximumf %39, %40 : vector<8x256xf32>
    %c1_i32_32 = arith.constant 1 : i32
    %c1_i32_33 = arith.constant 1 : i32
    %c1_i32_34 = arith.constant 1 : i32
    %c0_i32_35 = arith.constant 0 : i32
    %c0_i32_36 = arith.constant 0 : i32
    %42 = tpu.memref_slice %arg3[%c1_i32_32, %c0_i32_35, %c0_i32_36] : memref<3x256x256xbf16, #tpu.memory_space<any>> -> memref<1x256x256xbf16, #tpu.memory_space<any>>
    %43 = tpu.memref_squeeze %42 : memref<1x256x256xbf16, #tpu.memory_space<any>> -> memref<256x256xbf16, #tpu.memory_space<any>>
    %c0_i32_37 = arith.constant 0 : i32
    %c0_i32_38 = arith.constant 0 : i32
    %44 = tpu.memref_slice %arg10[%c1_i32_33, %c0_i32_37, %c0_i32_38] : memref<3x256x256xbf16, #tpu.memory_space<vmem>> -> memref<1x256x256xbf16, #tpu.memory_space<vmem>>
    %45 = tpu.memref_squeeze %44 : memref<1x256x256xbf16, #tpu.memory_space<vmem>> -> memref<256x256xbf16, #tpu.memory_space<vmem>>
    %46 = tpu.memref_slice %arg15[%c1_i32_34] : memref<7x!tpu.dma_semaphore, #tpu.memory_space<semaphore_mem>> -> memref<1x!tpu.dma_semaphore, #tpu.memory_space<semaphore_mem>>
    %47 = tpu.memref_squeeze %46 : memref<1x!tpu.dma_semaphore, #tpu.memory_space<semaphore_mem>> -> memref<!tpu.dma_semaphore, #tpu.memory_space<semaphore_mem>>
    tpu.wait_dma2 semaphore(%47 : memref<!tpu.dma_semaphore, #tpu.memory_space<semaphore_mem>>) src(%43 : memref<256x256xbf16, #tpu.memory_space<any>>) dst(%45 : memref<256x256xbf16, #tpu.memory_space<vmem>>)
    %c1 = arith.constant 1 : index
    %c0_39 = arith.constant 0 : index
    %c0_40 = arith.constant 0 : index
    %48 = vector.load %arg10[%c1, %c0_39, %c0_40] : memref<3x256x256xbf16, #tpu.memory_space<vmem>>, vector<1x256x256xbf16>
    %49 = vector.shape_cast %48 : vector<1x256x256xbf16> to vector<256x256xbf16>
    %c1_41 = arith.constant 1 : index
    %c0_42 = arith.constant 0 : index
    %50 = vector.load %arg2[%c1_41, %c0_42] : memref<8x256xf32, #tpu.memory_space<vmem>>, vector<1x256xf32>
    %51 = arith.truncf %41 : vector<8x256xf32> to vector<8x256xbf16>
    %cst_43 = arith.constant dense<0.000000e+00> : vector<8x256xf32>
    %52 = tpu.matmul %51, %49, %cst_43 {dimension_numbers = #tpu.dot_dimension_numbers<[1], [0], [0], [1], [0, 0, 1, 1], [], []>} : vector<8x256xbf16>, vector<256x256xbf16>, vector<8x256xf32> -> vector<8x256xf32>
    %53 = vector.broadcast %50 : vector<1x256xf32> to vector<8x256xf32>
    %54 = arith.addf %52, %53 : vector<8x256xf32>
    %cst_44 = arith.constant 0.000000e+00 : f32
    %55 = vector.broadcast %cst_44 : f32 to vector<8x256xf32>
    %56 = arith.maximumf %54, %55 : vector<8x256xf32>
    %c2_i32_45 = arith.constant 2 : i32
    %c2_i32_46 = arith.constant 2 : i32
    %c2_i32_47 = arith.constant 2 : i32
    %c0_i32_48 = arith.constant 0 : i32
    %c0_i32_49 = arith.constant 0 : i32
    %57 = tpu.memref_slice %arg3[%c2_i32_45, %c0_i32_48, %c0_i32_49] : memref<3x256x256xbf16, #tpu.memory_space<any>> -> memref<1x256x256xbf16, #tpu.memory_space<any>>
    %58 = tpu.memref_squeeze %57 : memref<1x256x256xbf16, #tpu.memory_space<any>> -> memref<256x256xbf16, #tpu.memory_space<any>>
    %c0_i32_50 = arith.constant 0 : i32
    %c0_i32_51 = arith.constant 0 : i32
    %59 = tpu.memref_slice %arg10[%c2_i32_46, %c0_i32_50, %c0_i32_51] : memref<3x256x256xbf16, #tpu.memory_space<vmem>> -> memref<1x256x256xbf16, #tpu.memory_space<vmem>>
    %60 = tpu.memref_squeeze %59 : memref<1x256x256xbf16, #tpu.memory_space<vmem>> -> memref<256x256xbf16, #tpu.memory_space<vmem>>
    %61 = tpu.memref_slice %arg15[%c2_i32_47] : memref<7x!tpu.dma_semaphore, #tpu.memory_space<semaphore_mem>> -> memref<1x!tpu.dma_semaphore, #tpu.memory_space<semaphore_mem>>
    %62 = tpu.memref_squeeze %61 : memref<1x!tpu.dma_semaphore, #tpu.memory_space<semaphore_mem>> -> memref<!tpu.dma_semaphore, #tpu.memory_space<semaphore_mem>>
    tpu.wait_dma2 semaphore(%62 : memref<!tpu.dma_semaphore, #tpu.memory_space<semaphore_mem>>) src(%58 : memref<256x256xbf16, #tpu.memory_space<any>>) dst(%60 : memref<256x256xbf16, #tpu.memory_space<vmem>>)
    %c2 = arith.constant 2 : index
    %c0_52 = arith.constant 0 : index
    %c0_53 = arith.constant 0 : index
    %63 = vector.load %arg10[%c2, %c0_52, %c0_53] : memref<3x256x256xbf16, #tpu.memory_space<vmem>>, vector<1x256x256xbf16>
    %64 = vector.shape_cast %63 : vector<1x256x256xbf16> to vector<256x256xbf16>
    %c2_54 = arith.constant 2 : index
    %c0_55 = arith.constant 0 : index
    %65 = vector.load %arg2[%c2_54, %c0_55] : memref<8x256xf32, #tpu.memory_space<vmem>>, vector<1x256xf32>
    %66 = arith.truncf %56 : vector<8x256xf32> to vector<8x256xbf16>
    %cst_56 = arith.constant dense<0.000000e+00> : vector<8x256xf32>
    %67 = tpu.matmul %66, %64, %cst_56 {dimension_numbers = #tpu.dot_dimension_numbers<[1], [0], [0], [1], [0, 0, 1, 1], [], []>} : vector<8x256xbf16>, vector<256x256xbf16>, vector<8x256xf32> -> vector<8x256xf32>
    %68 = vector.broadcast %65 : vector<1x256xf32> to vector<8x256xf32>
    %69 = arith.addf %67, %68 : vector<8x256xf32>
    %cst_57 = arith.constant 0.000000e+00 : f32
    %70 = vector.broadcast %cst_57 : f32 to vector<8x256xf32>
    %71 = arith.maximumf %69, %70 : vector<8x256xf32>
    %c3_i32_58 = arith.constant 3 : i32
    %72 = tpu.memref_slice %arg15[%c3_i32_58] : memref<7x!tpu.dma_semaphore, #tpu.memory_space<semaphore_mem>> -> memref<1x!tpu.dma_semaphore, #tpu.memory_space<semaphore_mem>>
    %73 = tpu.memref_squeeze %72 : memref<1x!tpu.dma_semaphore, #tpu.memory_space<semaphore_mem>> -> memref<!tpu.dma_semaphore, #tpu.memory_space<semaphore_mem>>
    tpu.wait_dma2 semaphore(%73 : memref<!tpu.dma_semaphore, #tpu.memory_space<semaphore_mem>>) src(%arg4 : memref<256x128xbf16, #tpu.memory_space<any>>) dst(%arg11 : memref<256x128xbf16, #tpu.memory_space<vmem>>)
    %c0_59 = arith.constant 0 : index
    %c0_60 = arith.constant 0 : index
    %74 = vector.load %arg11[%c0_59, %c0_60] : memref<256x128xbf16, #tpu.memory_space<vmem>>, vector<256x128xbf16>
    %c3 = arith.constant 3 : index
    %c0_61 = arith.constant 0 : index
    %75 = vector.load %arg2[%c3, %c0_61] : memref<8x256xf32, #tpu.memory_space<vmem>>, vector<1x128xf32>
    %76 = arith.truncf %71 : vector<8x256xf32> to vector<8x256xbf16>
    %cst_62 = arith.constant dense<0.000000e+00> : vector<8x128xf32>
    %77 = tpu.matmul %76, %74, %cst_62 {dimension_numbers = #tpu.dot_dimension_numbers<[1], [0], [0], [1], [0, 0, 1, 1], [], []>} : vector<8x256xbf16>, vector<256x128xbf16>, vector<8x128xf32> -> vector<8x128xf32>
    %78 = vector.broadcast %75 : vector<1x128xf32> to vector<8x128xf32>
    %79 = arith.addf %77, %78 : vector<8x128xf32>
    %80 = tpu.iota {dimensions = array<i32: 1>} : vector<8x128xi32>
    %c2_i32_63 = arith.constant 2 : i32
    %81 = vector.broadcast %c2_i32_63 : i32 to vector<8x128xi32>
    %82 = arith.cmpi slt, %80, %81 : vector<8x128xi32>
    %c8_i32 = arith.constant 8 : i32
    %83 = vector.broadcast %c8_i32 : i32 to vector<8x128xi32>
    %84 = arith.cmpi sge, %80, %83 : vector<8x128xi32>
    %c12_i32 = arith.constant 12 : i32
    %85 = vector.broadcast %c12_i32 : i32 to vector<8x128xi32>
    %86 = arith.cmpi slt, %80, %85 : vector<8x128xi32>
    %87 = arith.andi %84, %86 : vector<8x128xi1>
    %c12_i32_64 = arith.constant 12 : i32
    %88 = vector.broadcast %c12_i32_64 : i32 to vector<8x128xi32>
    %89 = arith.cmpi sge, %80, %88 : vector<8x128xi32>
    %c16_i32 = arith.constant 16 : i32
    %90 = vector.broadcast %c16_i32 : i32 to vector<8x128xi32>
    %91 = arith.cmpi slt, %80, %90 : vector<8x128xi32>
    %92 = arith.andi %89, %91 : vector<8x128xi1>
    %cst_65 = arith.constant -1.000000e+30 : f32
    %93 = vector.broadcast %cst_65 : f32 to vector<8x128xf32>
    %94 = arith.select %82, %79, %93 : vector<8x128xi1>, vector<8x128xf32>
    %cst_66 = arith.constant dense<0xFF800000> : vector<8xf32>
    %95 = vector.multi_reduction <maximumf>, %94, %cst_66 [1] : vector<8x128xf32> to vector<8xf32>
    %96 = vector.shape_cast %95 : vector<8xf32> to vector<8x1xf32>
    %97 = vector.broadcast %96 : vector<8x1xf32> to vector<8x128xf32>
    %98 = arith.subf %94, %97 : vector<8x128xf32>
    %99 = math.exp %98 : vector<8x128xf32>
    %cst_67 = arith.constant dense<0.000000e+00> : vector<8xf32>
    %100 = vector.multi_reduction <add>, %99, %cst_67 [1] : vector<8x128xf32> to vector<8xf32>
    %101 = vector.shape_cast %100 : vector<8xf32> to vector<8x1xf32>
    %102 = vector.broadcast %101 : vector<8x1xf32> to vector<8x128xf32>
    %103 = arith.divf %99, %102 : vector<8x128xf32>
    %cst_68 = arith.constant 0.000000e+00 : f32
    %104 = vector.broadcast %cst_68 : f32 to vector<8x128xf32>
    %105 = arith.maximumf %79, %104 : vector<8x128xf32>
    %106 = math.absf %79 : vector<8x128xf32>
    %cst_69 = arith.constant 0.000000e+00 : f32
    %107 = vector.broadcast %cst_69 : f32 to vector<8x128xf32>
    %108 = arith.subf %107, %106 : vector<8x128xf32>
    %109 = math.exp %108 : vector<8x128xf32>
    %110 = math.log1p %109 : vector<8x128xf32>
    %111 = arith.addf %105, %110 : vector<8x128xf32>
    %cst_70 = arith.constant 0.000000e+00 : f32
    %112 = vector.broadcast %cst_70 : f32 to vector<8x128xf32>
    %113 = arith.select %92, %111, %112 : vector<8x128xi1>, vector<8x128xf32>
    %cst_71 = arith.constant 0.000000e+00 : f32
    %114 = vector.broadcast %cst_71 : f32 to vector<8x128xf32>
    %115 = arith.select %87, %79, %114 : vector<8x128xi1>, vector<8x128xf32>
    %c120_i32 = arith.constant 120 : i32
    %116 = tpu.dynamic_rotate %113 by %c120_i32 dim 1 : vector<8x128xf32>, i32 -> vector<8x128xf32>
    %c124_i32 = arith.constant 124 : i32
    %117 = tpu.dynamic_rotate %115 by %c124_i32 dim 1 : vector<8x128xf32>, i32 -> vector<8x128xf32>
    %c0_72 = arith.constant 0 : index
    %c0_73 = arith.constant 0 : index
    %118 = vector.load %arg1[%c0_72, %c0_73] : memref<8x128xf32, #tpu.memory_space<vmem>>, vector<8x128xf32>
    %119 = math.sqrt %116 : vector<8x128xf32>
    %120 = arith.mulf %118, %119 : vector<8x128xf32>
    %121 = arith.addf %120, %117 : vector<8x128xf32>
    %cst_74 = arith.constant 0.000000e+00 : f32
    %122 = vector.broadcast %cst_74 : f32 to vector<8x128xf32>
    %123 = arith.select %82, %79, %122 : vector<8x128xi1>, vector<8x128xf32>
    %c2_i32_75 = arith.constant 2 : i32
    %124 = tpu.dynamic_rotate %103 by %c2_i32_75 dim 1 : vector<8x128xf32>, i32 -> vector<8x128xf32>
    %125 = arith.addf %123, %124 : vector<8x128xf32>
    %126 = arith.addf %125, %121 : vector<8x128xf32>
    %127 = arith.addf %126, %115 : vector<8x128xf32>
    %128 = arith.addf %127, %113 : vector<8x128xf32>
    %c0_76 = arith.constant 0 : index
    %c0_77 = arith.constant 0 : index
    %129 = vector.load %arg8[%c0_76, %c0_77] : memref<8x128xf32, #tpu.memory_space<vmem>>, vector<8x128xf32>
    tpu.vector_store %arg8[%c0_76, %c0_77], %128 {strides = array<i32>} : memref<8x128xf32, #tpu.memory_space<vmem>>, vector<8x128xf32>,
    %c4_i32_78 = arith.constant 4 : i32
    %130 = tpu.memref_slice %arg15[%c4_i32_78] : memref<7x!tpu.dma_semaphore, #tpu.memory_space<semaphore_mem>> -> memref<1x!tpu.dma_semaphore, #tpu.memory_space<semaphore_mem>>
    %131 = tpu.memref_squeeze %130 : memref<1x!tpu.dma_semaphore, #tpu.memory_space<semaphore_mem>> -> memref<!tpu.dma_semaphore, #tpu.memory_space<semaphore_mem>>
    tpu.wait_dma2 semaphore(%131 : memref<!tpu.dma_semaphore, #tpu.memory_space<semaphore_mem>>) src(%arg5 : memref<128x256xbf16, #tpu.memory_space<any>>) dst(%arg12 : memref<128x256xbf16, #tpu.memory_space<vmem>>)
    %c0_79 = arith.constant 0 : index
    %c0_80 = arith.constant 0 : index
    %132 = vector.load %arg12[%c0_79, %c0_80] : memref<128x256xbf16, #tpu.memory_space<vmem>>, vector<128x256xbf16>
    %c4 = arith.constant 4 : index
    %c0_81 = arith.constant 0 : index
    %133 = vector.load %arg2[%c4, %c0_81] : memref<8x256xf32, #tpu.memory_space<vmem>>, vector<1x256xf32>
    %134 = arith.truncf %121 : vector<8x128xf32> to vector<8x128xbf16>
    %cst_82 = arith.constant dense<0.000000e+00> : vector<8x256xf32>
    %135 = tpu.matmul %134, %132, %cst_82 {dimension_numbers = #tpu.dot_dimension_numbers<[1], [0], [0], [1], [0, 0, 1, 1], [], []>} : vector<8x128xbf16>, vector<128x256xbf16>, vector<8x256xf32> -> vector<8x256xf32>
    %136 = vector.broadcast %133 : vector<1x256xf32> to vector<8x256xf32>
    %137 = arith.addf %135, %136 : vector<8x256xf32>
    %138 = math.tanh %137 : vector<8x256xf32>
    %139 = vector.extract_strided_slice %138 {offsets = [0, 0], sizes = [8, 128], strides = [1, 1]} : vector<8x256xf32> to vector<8x128xf32>
    %140 = vector.extract_strided_slice %138 {offsets = [0, 128], sizes = [8, 128], strides = [1, 1]} : vector<8x256xf32> to vector<8x128xf32>
    %c5_i32_83 = arith.constant 5 : i32
    %141 = tpu.memref_slice %arg15[%c5_i32_83] : memref<7x!tpu.dma_semaphore, #tpu.memory_space<semaphore_mem>> -> memref<1x!tpu.dma_semaphore, #tpu.memory_space<semaphore_mem>>
    %142 = tpu.memref_squeeze %141 : memref<1x!tpu.dma_semaphore, #tpu.memory_space<semaphore_mem>> -> memref<!tpu.dma_semaphore, #tpu.memory_space<semaphore_mem>>
    tpu.wait_dma2 semaphore(%142 : memref<!tpu.dma_semaphore, #tpu.memory_space<semaphore_mem>>) src(%arg6 : memref<128x128xbf16, #tpu.memory_space<any>>) dst(%arg13 : memref<128x128xbf16, #tpu.memory_space<vmem>>)
    %c5 = arith.constant 5 : index
    %c0_84 = arith.constant 0 : index
    %143 = vector.load %arg2[%c5, %c0_84] : memref<8x256xf32, #tpu.memory_space<vmem>>, vector<1x128xf32>
    %c0_85 = arith.constant 0 : index
    %c0_86 = arith.constant 0 : index
    %144 = vector.load %arg13[%c0_85, %c0_86] : memref<128x128xbf16, #tpu.memory_space<vmem>>, vector<128x128xbf16>
    %145 = arith.truncf %139 : vector<8x128xf32> to vector<8x128xbf16>
    %cst_87 = arith.constant dense<0.000000e+00> : vector<8x128xf32>
    %146 = tpu.matmul %145, %144, %cst_87 {dimension_numbers = #tpu.dot_dimension_numbers<[1], [0], [0], [1], [0, 0, 1, 1], [], []>} : vector<8x128xbf16>, vector<128x128xbf16>, vector<8x128xf32> -> vector<8x128xf32>
    %147 = vector.broadcast %143 : vector<1x128xf32> to vector<8x128xf32>
    %148 = arith.addf %146, %147 : vector<8x128xf32>
    %149 = math.tanh %148 : vector<8x128xf32>
    %c0_88 = arith.constant 0 : index
    %c0_89 = arith.constant 0 : index
    %150 = vector.load %arg13[%c0_88, %c0_89] : memref<128x128xbf16, #tpu.memory_space<vmem>>, vector<128x128xbf16>
    %151 = arith.truncf %140 : vector<8x128xf32> to vector<8x128xbf16>
    %cst_90 = arith.constant dense<0.000000e+00> : vector<8x128xf32>
    %152 = tpu.matmul %151, %150, %cst_90 {dimension_numbers = #tpu.dot_dimension_numbers<[1], [0], [0], [1], [0, 0, 1, 1], [], []>} : vector<8x128xbf16>, vector<128x128xbf16>, vector<8x128xf32> -> vector<8x128xf32>
    %153 = vector.broadcast %143 : vector<1x128xf32> to vector<8x128xf32>
    %154 = arith.addf %152, %153 : vector<8x128xf32>
    %155 = math.tanh %154 : vector<8x128xf32>
    %c6_i32_91 = arith.constant 6 : i32
    %156 = tpu.memref_slice %arg15[%c6_i32_91] : memref<7x!tpu.dma_semaphore, #tpu.memory_space<semaphore_mem>> -> memref<1x!tpu.dma_semaphore, #tpu.memory_space<semaphore_mem>>
    %157 = tpu.memref_squeeze %156 : memref<1x!tpu.dma_semaphore, #tpu.memory_space<semaphore_mem>> -> memref<!tpu.dma_semaphore, #tpu.memory_space<semaphore_mem>>
    tpu.wait_dma2 semaphore(%157 : memref<!tpu.dma_semaphore, #tpu.memory_space<semaphore_mem>>) src(%arg7 : memref<128x256xbf16, #tpu.memory_space<any>>) dst(%arg14 : memref<128x256xbf16, #tpu.memory_space<vmem>>)
    %c6 = arith.constant 6 : index
    %c0_92 = arith.constant 0 : index
    %158 = vector.load %arg2[%c6, %c0_92] : memref<8x256xf32, #tpu.memory_space<vmem>>, vector<1x256xf32>
    %c0_93 = arith.constant 0 : index
    %c0_94 = arith.constant 0 : index
    %159 = vector.load %arg14[%c0_93, %c0_94] : memref<128x256xbf16, #tpu.memory_space<vmem>>, vector<128x256xbf16>
    %160 = arith.truncf %149 : vector<8x128xf32> to vector<8x128xbf16>
    %cst_95 = arith.constant dense<0.000000e+00> : vector<8x256xf32>
    %161 = tpu.matmul %160, %159, %cst_95 {dimension_numbers = #tpu.dot_dimension_numbers<[1], [0], [0], [1], [0, 0, 1, 1], [], []>} : vector<8x128xbf16>, vector<128x256xbf16>, vector<8x256xf32> -> vector<8x256xf32>
    %162 = vector.broadcast %158 : vector<1x256xf32> to vector<8x256xf32>
    %163 = arith.addf %161, %162 : vector<8x256xf32>
    %164 = math.tanh %163 : vector<8x256xf32>
    %c0_96 = arith.constant 0 : index
    %c0_97 = arith.constant 0 : index
    %165 = vector.load %arg9[%c0_96, %c0_97] : memref<8x512xf32, #tpu.memory_space<vmem>>, vector<8x256xf32>
    tpu.vector_store %arg9[%c0_96, %c0_97], %164 {strides = array<i32>} : memref<8x512xf32, #tpu.memory_space<vmem>>, vector<8x256xf32>,
    %c0_98 = arith.constant 0 : index
    %c0_99 = arith.constant 0 : index
    %166 = vector.load %arg14[%c0_98, %c0_99] : memref<128x256xbf16, #tpu.memory_space<vmem>>, vector<128x256xbf16>
    %167 = arith.truncf %155 : vector<8x128xf32> to vector<8x128xbf16>
    %cst_100 = arith.constant dense<0.000000e+00> : vector<8x256xf32>
    %168 = tpu.matmul %167, %166, %cst_100 {dimension_numbers = #tpu.dot_dimension_numbers<[1], [0], [0], [1], [0, 0, 1, 1], [], []>} : vector<8x128xbf16>, vector<128x256xbf16>, vector<8x256xf32> -> vector<8x256xf32>
    %169 = vector.broadcast %158 : vector<1x256xf32> to vector<8x256xf32>
    %170 = arith.addf %168, %169 : vector<8x256xf32>
    %171 = math.tanh %170 : vector<8x256xf32>
    %c0_101 = arith.constant 0 : index
    %c256 = arith.constant 256 : index
    %172 = vector.load %arg9[%c0_101, %c256] : memref<8x512xf32, #tpu.memory_space<vmem>>, vector<8x256xf32>
    tpu.vector_store %arg9[%c0_101, %c256], %171 {strides = array<i32>} : memref<8x512xf32, #tpu.memory_space<vmem>>, vector<8x256xf32>,
    return
  }
}

</mosaic_0001>

<llo_original>
// kernel: gmvae_forward.1
$region0: #{gmvae_forward.1}
  #allocation0 [shape = 'u32[]', space=smem, size = 0x4, offset = 0x4, fixed_abs, tag = 'smem constant byte address 0x4 - core index']
  #allocation1 [shape = 'u32[72,128]{1,0:T(1,128)}', space=vmem, size = 0x9000, scoped, tag = 'internal scratch']
  #allocation2 [shape = 'bf16[3,256,256]{2,1,0:T(8,128)(2,1)}', space=vmem, size = 0x60000, scoped, tag = 'scratch operand']
  #allocation3 [shape = 'bf16[256,128]{1,0:T(8,128)(2,1)}', space=vmem, size = 0x10000, scoped, tag = 'scratch operand']
  #allocation4 [shape = 'bf16[128,256]{1,0:T(8,128)(2,1)}', space=vmem, size = 0x10000, scoped, tag = 'scratch operand']
  #allocation5 [shape = 'bf16[128,128]{1,0:T(8,128)(2,1)}', space=vmem, size = 0x8000, scoped, tag = 'scratch operand']
  #allocation6 [shape = 'bf16[128,256]{1,0:T(8,128)(2,1)}', space=vmem, size = 0x10000, scoped, tag = 'scratch operand']
  #allocation7 [shape = 's32[7]{0}', space=sflag, size = 0x1c, scoped, tag = 'scratch operand']
  #allocation10 [shape = 's32[]', space=sflag, size = 0x4, offset = 0, fixed_abs, tag = 'sflag constant byte address 0x0 - dummy sync flag']
  #allocation11 [shape = 's32[]', space=sflag, size = 0x4, offset = 0, fixed_abs, tag = 'sflag constant byte address 0x0 - dummy sync flag']
  #allocation12 [shape = 'u32[]', space=smem, size = 0x4, offset = 0x44, fixed_abs, tag = 'smem constant byte address 0x44 - assertion arg 0']
  #allocation13 [shape = 'u32[]', space=smem, size = 0x4, offset = 0x48, fixed_abs, tag = 'smem constant byte address 0x48 - assertion arg 1']
  #allocation14 [shape = 's32[]', space=sflag, size = 0x4, offset = 0, fixed_abs, tag = 'sflag constant byte address 0x0 - dummy sync flag']
  #allocation15 [shape = 's32[]', space=sflag, size = 0x4, offset = 0, fixed_abs, tag = 'sflag constant byte address 0x0 - dummy sync flag']
  #allocation16 [shape = 's32[]', space=sflag, size = 0x4, offset = 0, fixed_abs, tag = 'sflag constant byte address 0x0 - dummy sync flag']
  #allocation17 [shape = 's32[]', space=sflag, size = 0x4, offset = 0, fixed_abs, tag = 'sflag constant byte address 0x0 - dummy sync flag']
  #allocation18 [shape = 's32[]', space=sflag, size = 0x4, offset = 0, fixed_abs, tag = 'sflag constant byte address 0x0 - dummy sync flag']
  #allocation19 [shape = 's32[]', space=sflag, size = 0x4, offset = 0, fixed_abs, tag = 'sflag constant byte address 0x0 - dummy sync flag']
  #allocation20 [shape = 's32[]', space=sflag, size = 0x4, offset = 0, fixed_abs, tag = 'sflag constant byte address 0x0 - dummy sync flag']
  #allocation21 [shape = 's32[]', space=sflag, size = 0x4, offset = 0, fixed_abs, tag = 'sflag constant byte address 0x0 - dummy sync flag']
  #allocation22 [shape = 's32[]', space=sflag, size = 0x4, offset = 0, fixed_abs, tag = 'sflag constant byte address 0x0 - dummy sync flag']
  #allocation23 [shape = 's32[]', space=sflag, size = 0x4, offset = 0, fixed_abs, tag = 'sflag constant byte address 0x0 - dummy sync flag']
  %s0 = inlined_call_operand.vmem [shape: f32[8,256], index: 0, kind: input, shape index: {}]
  %s1 = inlined_call_operand.vmem [shape: f32[8,128], index: 1, kind: input, shape index: {}]
  %s2 = inlined_call_operand.hbm [shape: f32[8,256], index: 2, kind: input, shape index: {}]
  %s3 = inlined_call_operand.hbm [shape: bf16[3,256,256], index: 3, kind: input, shape index: {}]
  %s4 = inlined_call_operand.vmem [shape: bf16[256,128], index: 4, kind: input, shape index: {}]
  %s5 = inlined_call_operand.hbm [shape: bf16[128,256], index: 5, kind: input, shape index: {}]
  %s6 = inlined_call_operand.vmem [shape: bf16[128,128], index: 6, kind: input, shape index: {}]
  %s7 = inlined_call_operand.hbm [shape: bf16[128,256], index: 7, kind: input, shape index: {}]
  %s8 = inlined_call_operand.vmem [shape: f32[8,128], index: 8, kind: output, shape index: {0}]
  %s9 = inlined_call_operand.vmem [shape: f32[8,512], index: 9, kind: output, shape index: {1}]
  %10 = xla_tuple %s8, %s9
  %s11 = sld [smem:[#allocation0]]
  $region92: #{gmvae_forward.1} parent=0
    _
  %s13 = ssub.s32 1, %s11
  %s14 = scalar_select 0, %s13, %s11
  $region1: #{gmvae_forward.1} parent=0
    #allocation8 [shape = 'u8[8192]{0}', space=vmem, size = 0x2000, scoped, tag = 'input window, operand 2, single buffered']
    #allocation9 [shape = 's32[1]{0}', space=sflag, size = 0x4, scoped, tag = 'scoped memory for gmvae_forward.1']
    %15 = vsyncpa [#allocation9], 0
    // Predicated region
    $region2: #{gmvae_forward.1} parent=1 // pred_check
      _
    $region3: #{gmvae_forward.1} parent=1 // pred_check_branch
      %17 = sbr.rel (0) target = $region5
    $region4: #{gmvae_forward.1} parent=1 // pred_region
      _
    $region5: #{gmvae_forward.1} parent=1 // pred_fallthru
      _
    // Predicated region
    $region6: #{gmvae_forward.1} parent=1 // pred_check
      _
    $region7: #{gmvae_forward.1} parent=1 // pred_check_branch
      %19 = sbr.rel (0) target = $region9
    $region8: #{gmvae_forward.1} parent=1 // pred_region
      _
    $region9: #{gmvae_forward.1} parent=1 // pred_fallthru
      _
    // Predicated region
    $region10: #{gmvae_forward.1} parent=1 // pred_check
      _
    $region11: #{gmvae_forward.1} parent=1 // pred_check_branch
      %21 = sbr.rel (0) target = $region13
    $region12: #{gmvae_forward.1} parent=1 // pred_region
      %23 = vsyncadd [#allocation9], 0
      %s25 = sshll.u32 %s2, 4
      %s26 = int_to_ptr.hbm [resolvable:$true] %s25
      %s27 = sshll.u32 [#allocation8], 4
      %s28 = int_to_ptr.vmem [resolvable:$true] %s27
      %30 = dma.hbm_to_vmem [thread:$0]  %s26, 256, %s28, [#allocation9]
    $region13: #{gmvae_forward.1} parent=1 // pred_fallthru
      _
    // Predicated region
    $region14: #{gmvae_forward.1} parent=1 // pred_check
      _
    $region15: #{gmvae_forward.1} parent=1 // pred_check_branch
      %32 = sbr.rel (0) target = $region17
    $region16: #{gmvae_forward.1} parent=1 // pred_region
      %34 = dma.done [#allocation9], 256
    $region17: #{gmvae_forward.1} parent=1 // pred_fallthru
      _
    // Predicated region
    $region18: #{gmvae_forward.1} parent=1 // pred_check
      _
    $region19: #{gmvae_forward.1} parent=1 // pred_check_branch
      %36 = sbr.rel target = $region21
    $region20: #{gmvae_forward.1} parent=1 // pred_region
      %37 = sst [smem:[#allocation12]] [#allocation11]
      %38 = sst [smem:[#allocation13]] [#allocation10]
    $region21: #{gmvae_forward.1} parent=1 // pred_fallthru
      _
    %40 = shalt.err (0)
    %s42 = sshll.u32 %s3, 4
    %s43 = int_to_ptr.hbm [resolvable:$true] %s42
    %s44 = sshll.u32 [#allocation2], 4
    %s45 = int_to_ptr.vmem [resolvable:$true] %s44
    %47 = dma.hbm_to_vmem [thread:$0]  %s43, 4096, %s45, [#allocation7]
    %s48 = scalar_lea.hbm %s3, 256
    %s49 = scalar_lea.vmem [#allocation2], 256
    %s50 = scalar_lea.sflag [#allocation7], 1
    // Predicated region
    $region22: #{gmvae_forward.1} parent=1 // pred_check
      _
    $region23: #{gmvae_forward.1} parent=1 // pred_check_branch
      %52 = sbr.rel target = $region25
    $region24: #{gmvae_forward.1} parent=1 // pred_region
      %53 = sst [smem:[#allocation12]] [#allocation15]
      %54 = sst [smem:[#allocation13]] [#allocation14]
    $region25: #{gmvae_forward.1} parent=1 // pred_fallthru
      _
    %56 = shalt.err (0)
    %s58 = sshll.u32 %s48, 4
    %s59 = int_to_ptr.hbm [resolvable:$true] %s58
    %s60 = sshll.u32 %s49, 4
    %s61 = int_to_ptr.vmem [resolvable:$true] %s60
    %63 = dma.hbm_to_vmem [thread:$0]  %s59, 4096, %s61, %s50
    %s64 = scalar_lea.hbm %s3, 512
    %s65 = scalar_lea.vmem [#allocation2], 512
    %s66 = scalar_lea.sflag [#allocation7], 2
    // Predicated region
    $region26: #{gmvae_forward.1} parent=1 // pred_check
      _
    $region27: #{gmvae_forward.1} parent=1 // pred_check_branch
      %68 = sbr.rel target = $region29
    $region28: #{gmvae_forward.1} parent=1 // pred_region
      %69 = sst [smem:[#allocation12]] [#allocation17]
      %70 = sst [smem:[#allocation13]] [#allocation16]
    $region29: #{gmvae_forward.1} parent=1 // pred_fallthru
      _
    %72 = shalt.err (0)
    %s74 = sshll.u32 %s64, 4
    %s75 = int_to_ptr.hbm [resolvable:$true] %s74
    %s76 = sshll.u32 %s65, 4
    %s77 = int_to_ptr.vmem [resolvable:$true] %s76
    %79 = dma.hbm_to_vmem [thread:$0]  %s75, 4096, %s77, %s66
    %s80 = scalar_lea.sflag [#allocation7], 3
    // Predicated region
    $region30: #{gmvae_forward.1} parent=1 // pred_check
      _
    $region31: #{gmvae_forward.1} parent=1 // pred_check_branch
      %82 = sbr.rel (0) target = $region33
    $region32: #{gmvae_forward.1} parent=1 // pred_region
      loop: start=0, step=1, limit=1
      $region34: #{gmvae_forward.1} parent=32 // loop_pre_header
        _
      $region35: #{gmvae_forward.1} parent=32 // loop_header
        %s84 = sphi 0, %s88
        %p85 = scmp.ge.s32.totalorder %s84, 1
        %s89 = sphi %s4, %s4
        %s90 = sphi [#allocation3], [#allocation3]
      $region36: #{gmvae_forward.1} parent=32 // loop_header_branch
        %87 = sbr.rel (%p85) target = $region40
      $region37: #{gmvae_forward.1} parent=32 // loop_body
        %v91 = vld [vmem:[%s89] sm:$0xff]
        %92 = vst [vmem:[%s90] sm:$0xff] %v91
        %v93 = vld [vmem:[%s89 + $0x8] sm:$0xff]
        %94 = vst [vmem:[%s90 + $0x8] sm:$0xff] %v93
        %v95 = vld [vmem:[%s89 + $0x10] sm:$0xff]
        %96 = vst [vmem:[%s90 + $0x10] sm:$0xff] %v95
        %v97 = vld [vmem:[%s89 + $0x18] sm:$0xff]
        %98 = vst [vmem:[%s90 + $0x18] sm:$0xff] %v97
        %v99 = vld [vmem:[%s89 + $0x20] sm:$0xff]
        %100 = vst [vmem:[%s90 + $0x20] sm:$0xff] %v99
        %v101 = vld [vmem:[%s89 + $0x28] sm:$0xff]
        %102 = vst [vmem:[%s90 + $0x28] sm:$0xff] %v101
        %v103 = vld [vmem:[%s89 + $0x30] sm:$0xff]
        %104 = vst [vmem:[%s90 + $0x30] sm:$0xff] %v103
        %v105 = vld [vmem:[%s89 + $0x38] sm:$0xff]
        %106 = vst [vmem:[%s90 + $0x38] sm:$0xff] %v105
        %v107 = vld [vmem:[%s89 + $0x40] sm:$0xff]
        %108 = vst [vmem:[%s90 + $0x40] sm:$0xff] %v107
        %v109 = vld [vmem:[%s89 + $0x48] sm:$0xff]
        %110 = vst [vmem:[%s90 + $0x48] sm:$0xff] %v109
        %v111 = vld [vmem:[%s89 + $0x50] sm:$0xff]
        %112 = vst [vmem:[%s90 + $0x50] sm:$0xff] %v111
        %v113 = vld [vmem:[%s89 + $0x58] sm:$0xff]
        %114 = vst [vmem:[%s90 + $0x58] sm:$0xff] %v113
        %v115 = vld [vmem:[%s89 + $0x60] sm:$0xff]
        %116 = vst [vmem:[%s90 + $0x60] sm:$0xff] %v115
        %v117 = vld [vmem:[%s89 + $0x68] sm:$0xff]
        %118 = vst [vmem:[%s90 + $0x68] sm:$0xff] %v117
        %v119 = vld [vmem:[%s89 + $0x70] sm:$0xff]
        %120 = vst [vmem:[%s90 + $0x70] sm:$0xff] %v119
        %v121 = vld [vmem:[%s89 + $0x78] sm:$0xff]
        %122 = vst [vmem:[%s90 + $0x78] sm:$0xff] %v121
      $region38: #{gmvae_forward.1} parent=32 // loop_footer
        %s88 = sadd.s32 1, %s84
      $region39: #{gmvae_forward.1} parent=32 // loop_footer_branch
        %83 = sbr.rel target = $region35
      $region40: #{gmvae_forward.1} parent=32 // loop_exit
        _
    $region33: #{gmvae_forward.1} parent=1 // pred_fallthru
      _
    // Predicated region
    $region41: #{gmvae_forward.1} parent=1 // pred_check
      _
    $region42: #{gmvae_forward.1} parent=1 // pred_check_branch
      %124 = sbr.rel target = $region44
    $region43: #{gmvae_forward.1} parent=1 // pred_region
      _
    $region44: #{gmvae_forward.1} parent=1 // pred_fallthru
      _
    // Predicated region
    $region45: #{gmvae_forward.1} parent=1 // pred_check
      _
    $region46: #{gmvae_forward.1} parent=1 // pred_check_branch
      %127 = sbr.rel (0) target = $region48
    $region47: #{gmvae_forward.1} parent=1 // pred_region
      %128 = vsyncadd %s80, 2048
    $region48: #{gmvae_forward.1} parent=1 // pred_fallthru
      _
    %s129 = scalar_lea.sflag [#allocation7], 4
    // Predicated region
    $region49: #{gmvae_forward.1} parent=1 // pred_check
      _
    $region50: #{gmvae_forward.1} parent=1 // pred_check_branch
      %131 = sbr.rel target = $region52
    $region51: #{gmvae_forward.1} parent=1 // pred_region
      %132 = sst [smem:[#allocation12]] [#allocation20]
      %133 = sst [smem:[#allocation13]] [#allocation19]
    $region52: #{gmvae_forward.1} parent=1 // pred_fallthru
      _
    %135 = shalt.err (0)
    %s137 = sshll.u32 %s5, 4
    %s138 = int_to_ptr.hbm [resolvable:$true] %s137
    %s139 = sshll.u32 [#allocation4], 4
    %s140 = int_to_ptr.vmem [resolvable:$true] %s139
    %142 = dma.hbm_to_vmem [thread:$0]  %s138, 2048, %s140, %s129
    %s143 = scalar_lea.sflag [#allocation7], 5
    // Predicated region
    $region53: #{gmvae_forward.1} parent=1 // pred_check
      _
    $region54: #{gmvae_forward.1} parent=1 // pred_check_branch
      %145 = sbr.rel (0) target = $region56
    $region55: #{gmvae_forward.1} parent=1 // pred_region
      loop: start=0, step=1, limit=1
      $region57: #{gmvae_forward.1} parent=55 // loop_pre_header
        _
      $region58: #{gmvae_forward.1} parent=55 // loop_header
        %s147 = sphi 0, %s151
        %p148 = scmp.ge.s32.totalorder %s147, 1
        %s152 = sphi %s6, %s6
        %s153 = sphi [#allocation5], [#allocation5]
      $region59: #{gmvae_forward.1} parent=55 // loop_header_branch
        %150 = sbr.rel (%p148) target = $region63
      $region60: #{gmvae_forward.1} parent=55 // loop_body
        %v154 = vld [vmem:[%s152] sm:$0xff]
        %155 = vst [vmem:[%s153] sm:$0xff] %v154
        %v156 = vld [vmem:[%s152 + $0x8] sm:$0xff]
        %157 = vst [vmem:[%s153 + $0x8] sm:$0xff] %v156
        %v158 = vld [vmem:[%s152 + $0x10] sm:$0xff]
        %159 = vst [vmem:[%s153 + $0x10] sm:$0xff] %v158
        %v160 = vld [vmem:[%s152 + $0x18] sm:$0xff]
        %161 = vst [vmem:[%s153 + $0x18] sm:$0xff] %v160
        %v162 = vld [vmem:[%s152 + $0x20] sm:$0xff]
        %163 = vst [vmem:[%s153 + $0x20] sm:$0xff] %v162
        %v164 = vld [vmem:[%s152 + $0x28] sm:$0xff]
        %165 = vst [vmem:[%s153 + $0x28] sm:$0xff] %v164
        %v166 = vld [vmem:[%s152 + $0x30] sm:$0xff]
        %167 = vst [vmem:[%s153 + $0x30] sm:$0xff] %v166
        %v168 = vld [vmem:[%s152 + $0x38] sm:$0xff]
        %169 = vst [vmem:[%s153 + $0x38] sm:$0xff] %v168
      $region61: #{gmvae_forward.1} parent=55 // loop_footer
        %s151 = sadd.s32 1, %s147
      $region62: #{gmvae_forward.1} parent=55 // loop_footer_branch
        %146 = sbr.rel target = $region58
      $region63: #{gmvae_forward.1} parent=55 // loop_exit
        _
    $region56: #{gmvae_forward.1} parent=1 // pred_fallthru
      _
    // Predicated region
    $region64: #{gmvae_forward.1} parent=1 // pred_check
      _
    $region65: #{gmvae_forward.1} parent=1 // pred_check_branch
      %171 = sbr.rel target = $region67
    $region66: #{gmvae_forward.1} parent=1 // pred_region
      _
    $region67: #{gmvae_forward.1} parent=1 // pred_fallthru
      _
    // Predicated region
    $region68: #{gmvae_forward.1} parent=1 // pred_check
      _
    $region69: #{gmvae_forward.1} parent=1 // pred_check_branch
      %174 = sbr.rel (0) target = $region71
    $region70: #{gmvae_forward.1} parent=1 // pred_region
      %175 = vsyncadd %s143, 1024
    $region71: #{gmvae_forward.1} parent=1 // pred_fallthru
      _
    %s176 = scalar_lea.sflag [#allocation7], 6
    // Predicated region
    $region72: #{gmvae_forward.1} parent=1 // pred_check
      _
    $region73: #{gmvae_forward.1} parent=1 // pred_check_branch
      %178 = sbr.rel target = $region75
    $region74: #{gmvae_forward.1} parent=1 // pred_region
      %179 = sst [smem:[#allocation12]] [#allocation23]
      %180 = sst [smem:[#allocation13]] [#allocation22]
    $region75: #{gmvae_forward.1} parent=1 // pred_fallthru
      _
    %182 = shalt.err (0)
    %s184 = sshll.u32 %s7, 4
    %s185 = int_to_ptr.hbm [resolvable:$true] %s184
    %s186 = sshll.u32 [#allocation6], 4
    %s187 = int_to_ptr.vmem [resolvable:$true] %s186
    %189 = dma.hbm_to_vmem [thread:$0]  %s185, 2048, %s187, %s176
    %v190 = vld [vmem:[%s0] sm:$0xff]
    %v191 = vld [vmem:[%s0 + $0x8] sm:$0xff]
    %s192 = smul.u32 4, 32
    %s193 = smul.u32 %s192, 2
    %s194 = sshll.u32 %s193, 4
    %195 = dma.done [#allocation7], %s194
    %v196 = vld [vmem:[#allocation2] sm:$0xff]
    %v197 = vld [vmem:[#allocation2 + $0x8] sm:$0xff]
    %v198 = vld [vmem:[#allocation2 + $0x10] sm:$0xff]
    %v199 = vld [vmem:[#allocation2 + $0x18] sm:$0xff]
    %v200 = vld [vmem:[#allocation2 + $0x20] sm:$0xff]
    %v201 = vld [vmem:[#allocation2 + $0x28] sm:$0xff]
    %v202 = vld [vmem:[#allocation2 + $0x30] sm:$0xff]
    %v203 = vld [vmem:[#allocation2 + $0x38] sm:$0xff]
    %v204 = vld [vmem:[#allocation2 + $0x40] sm:$0xff]
    %v205 = vld [vmem:[#allocation2 + $0x48] sm:$0xff]
    %v206 = vld [vmem:[#allocation2 + $0x50] sm:$0xff]
    %v207 = vld [vmem:[#allocation2 + $0x58] sm:$0xff]
    %v208 = vld [vmem:[#allocation2 + $0x60] sm:$0xff]
    %v209 = vld [vmem:[#allocation2 + $0x68] sm:$0xff]
    %v210 = vld [vmem:[#allocation2 + $0x70] sm:$0xff]
    %v211 = vld [vmem:[#allocation2 + $0x78] sm:$0xff]
    %v212 = vld [vmem:[#allocation2 + $0x80] sm:$0xff]
    %v213 = vld [vmem:[#allocation2 + $0x88] sm:$0xff]
    %v214 = vld [vmem:[#allocation2 + $0x90] sm:$0xff]
    %v215 = vld [vmem:[#allocation2 + $0x98] sm:$0xff]
    %v216 = vld [vmem:[#allocation2 + $0xa0] sm:$0xff]
    %v217 = vld [vmem:[#allocation2 + $0xa8] sm:$0xff]
    %v218 = vld [vmem:[#allocation2 + $0xb0] sm:$0xff]
    %v219 = vld [vmem:[#allocation2 + $0xb8] sm:$0xff]
    %v220 = vld [vmem:[#allocation2 + $0xc0] sm:$0xff]
    %v221 = vld [vmem:[#allocation2 + $0xc8] sm:$0xff]
    %v222 = vld [vmem:[#allocation2 + $0xd0] sm:$0xff]
    %v223 = vld [vmem:[#allocation2 + $0xd8] sm:$0xff]
    %v224 = vld [vmem:[#allocation2 + $0xe0] sm:$0xff]
    %v225 = vld [vmem:[#allocation2 + $0xe8] sm:$0xff]
    %v226 = vld [vmem:[#allocation2 + $0xf0] sm:$0xff]
    %v227 = vld [vmem:[#allocation2 + $0xf8] sm:$0xff]
    %v228 = vld [vmem:[#allocation8] ss:$8 sm:$0x3]
    %v229 = vpack.c.bf16 %v190, %v190
    %v230 = vpack.c.bf16 %v191, %v191
    %v232 = vperm.slane %v228, 0
    %v233 = vperm.slane %v228, 1
    %v268 = vunpack.c.l.b16 %v196
    %v269 = vunpack.c.h.b16 %v196
    %v270 = vunpack.c.l.b16 %v197
    %v271 = vunpack.c.h.b16 %v197
    %v272 = vunpack.c.l.b16 %v198
    %v273 = vunpack.c.h.b16 %v198
    %v274 = vunpack.c.l.b16 %v199
    %v275 = vunpack.c.h.b16 %v199
    %v276 = vunpack.c.l.b16 %v200
    %v277 = vunpack.c.h.b16 %v200
    %v278 = vunpack.c.l.b16 %v201
    %v279 = vunpack.c.h.b16 %v201
    %v280 = vunpack.c.l.b16 %v202
    %v281 = vunpack.c.h.b16 %v202
    %v282 = vunpack.c.l.b16 %v203
    %v283 = vunpack.c.h.b16 %v203
    %v284 = vunpack.c.l.b16 %v204
    %v285 = vunpack.c.h.b16 %v204
    %v286 = vunpack.c.l.b16 %v205
    %v287 = vunpack.c.h.b16 %v205
    %v288 = vunpack.c.l.b16 %v206
    %v289 = vunpack.c.h.b16 %v206
    %v290 = vunpack.c.l.b16 %v207
    %v291 = vunpack.c.h.b16 %v207
    %v292 = vunpack.c.l.b16 %v208
    %v293 = vunpack.c.h.b16 %v208
    %v294 = vunpack.c.l.b16 %v209
    %v295 = vunpack.c.h.b16 %v209
    %v296 = vunpack.c.l.b16 %v210
    %v297 = vunpack.c.h.b16 %v210
    %v298 = vunpack.c.l.b16 %v211
    %v299 = vunpack.c.h.b16 %v211
    %v300 = vunpack.c.l.b16 %v212
    %v301 = vunpack.c.h.b16 %v212
    %v302 = vunpack.c.l.b16 %v213
    %v303 = vunpack.c.h.b16 %v213
    %v304 = vunpack.c.l.b16 %v214
    %v305 = vunpack.c.h.b16 %v214
    %v306 = vunpack.c.l.b16 %v215
    %v307 = vunpack.c.h.b16 %v215
    %v308 = vunpack.c.l.b16 %v216
    %v309 = vunpack.c.h.b16 %v216
    %v310 = vunpack.c.l.b16 %v217
    %v311 = vunpack.c.h.b16 %v217
    %v312 = vunpack.c.l.b16 %v218
    %v313 = vunpack.c.h.b16 %v218
    %v314 = vunpack.c.l.b16 %v219
    %v315 = vunpack.c.h.b16 %v219
    %v316 = vunpack.c.l.b16 %v220
    %v317 = vunpack.c.h.b16 %v220
    %v318 = vunpack.c.l.b16 %v221
    %v319 = vunpack.c.h.b16 %v221
    %v320 = vunpack.c.l.b16 %v222
    %v321 = vunpack.c.h.b16 %v222
    %v322 = vunpack.c.l.b16 %v223
    %v323 = vunpack.c.h.b16 %v223
    %v324 = vunpack.c.l.b16 %v224
    %v325 = vunpack.c.h.b16 %v224
    %v326 = vunpack.c.l.b16 %v225
    %v327 = vunpack.c.h.b16 %v225
    %v328 = vunpack.c.l.b16 %v226
    %v329 = vunpack.c.h.b16 %v226
    %v330 = vunpack.c.l.b16 %v227
    %v331 = vunpack.c.h.b16 %v227
    %v332 = vpack.c.b16 %v270, %v268
    %v333 = vpack.c.b16 %v271, %v269
    %v334 = vpack.c.b16 %v274, %v272
    %v335 = vpack.c.b16 %v275, %v273
    %v336 = vpack.c.b16 %v278, %v276
    %v337 = vpack.c.b16 %v279, %v277
    %v338 = vpack.c.b16 %v282, %v280
    %v339 = vpack.c.b16 %v283, %v281
    %v340 = vpack.c.b16 %v286, %v284
    %v341 = vpack.c.b16 %v287, %v285
    %v342 = vpack.c.b16 %v290, %v288
    %v343 = vpack.c.b16 %v291, %v289
    %v344 = vpack.c.b16 %v294, %v292
    %v345 = vpack.c.b16 %v295, %v293
    %v346 = vpack.c.b16 %v298, %v296
    %v347 = vpack.c.b16 %v299, %v297
    %v348 = vpack.c.b16 %v302, %v300
    %v349 = vpack.c.b16 %v303, %v301
    %v350 = vpack.c.b16 %v306, %v304
    %v351 = vpack.c.b16 %v307, %v305
    %v352 = vpack.c.b16 %v310, %v308
    %v353 = vpack.c.b16 %v311, %v309
    %v354 = vpack.c.b16 %v314, %v312
    %v355 = vpack.c.b16 %v315, %v313
    %v356 = vpack.c.b16 %v318, %v316
    %v357 = vpack.c.b16 %v319, %v317
    %v358 = vpack.c.b16 %v322, %v320
    %v359 = vpack.c.b16 %v323, %v321
    %v360 = vpack.c.b16 %v326, %v324
    %v361 = vpack.c.b16 %v327, %v325
    %v362 = vpack.c.b16 %v330, %v328
    %v363 = vpack.c.b16 %v331, %v329
    %396 = vmatpush.bf16.msra.mxu0 %v346
    %397 = vmatpush.bf16.msra.mxu0 %v344
    %398 = vmatpush.bf16.msra.mxu0 %v342
    %399 = vmatpush.bf16.msra.mxu0 %v340
    %400 = vmatpush.bf16.msra.mxu0 %v338
    %401 = vmatpush.bf16.msra.mxu0 %v336
    %402 = vmatpush.bf16.msra.mxu0 %v334
    %403 = vmatpush.bf16.msra.mxu0 %v332
    %404 = vmatmul.bf16.gmra.mxu0 %v229
    %v405 = vpop.f32.mrf.mxu0
    %v406 = vadd.f32 %v232, %v405
    %v407 = vpop.f32.mrf.mxu0
    %408 = vdwg.mxu0
    %409 = vmatpush.bf16.msra.mxu0 %v362
    %410 = vmatpush.bf16.msra.mxu0 %v360
    %411 = vmatpush.bf16.msra.mxu0 %v358
    %412 = vmatpush.bf16.msra.mxu0 %v356
    %413 = vmatpush.bf16.msra.mxu0 %v354
    %414 = vmatpush.bf16.msra.mxu0 %v352
    %415 = vmatpush.bf16.msra.mxu0 %v350
    %416 = vmatpush.bf16.msra.mxu0 %v348
    %417 = vmatmul.bf16.gmra.mxu0 %v230
    %v418 = vpop.f32.mrf.mxu0
    %v419 = vadd.f32 %v406, %v418
    %v420 = vpop.f32.mrf.mxu0
    %421 = vdwg.mxu0
    %422 = vmatpush.bf16.msra.mxu0 %v347
    %423 = vmatpush.bf16.msra.mxu0 %v345
    %424 = vmatpush.bf16.msra.mxu0 %v343
    %425 = vmatpush.bf16.msra.mxu0 %v341
    %426 = vmatpush.bf16.msra.mxu0 %v339
    %427 = vmatpush.bf16.msra.mxu0 %v337
    %428 = vmatpush.bf16.msra.mxu0 %v335
    %429 = vmatpush.bf16.msra.mxu0 %v333
    %430 = vmatmul.bf16.gmra.mxu0 %v229
    %v431 = vpop.f32.mrf.mxu0
    %v432 = vadd.f32 %v233, %v431
    %v433 = vpop.f32.mrf.mxu0
    %434 = vdwg.mxu0
    %435 = vmatpush.bf16.msra.mxu0 %v363
    %436 = vmatpush.bf16.msra.mxu0 %v361
    %437 = vmatpush.bf16.msra.mxu0 %v359
    %438 = vmatpush.bf16.msra.mxu0 %v357
    %439 = vmatpush.bf16.msra.mxu0 %v355
    %440 = vmatpush.bf16.msra.mxu0 %v353
    %441 = vmatpush.bf16.msra.mxu0 %v351
    %442 = vmatpush.bf16.msra.mxu0 %v349
    %443 = vmatmul.bf16.gmra.mxu0 %v230
    %v444 = vpop.f32.mrf.mxu0
    %v445 = vadd.f32 %v432, %v444
    %v446 = vpop.f32.mrf.mxu0
    %447 = vdwg.mxu0
    %v448 = vmax.f32 %v419, 0.0
    %v449 = vmax.f32 %v445, 0.0
    %s450 = sshll.u32 %s193, 4
    %451 = dma.done %s50, %s450
    %v452 = vld [vmem:[%s49] sm:$0xff]
    %v453 = vld [vmem:[%s49 + $0x8] sm:$0xff]
    %v454 = vld [vmem:[%s49 + $0x10] sm:$0xff]
    %v455 = vld [vmem:[%s49 + $0x18] sm:$0xff]
    %v456 = vld [vmem:[%s49 + $0x20] sm:$0xff]
    %v457 = vld [vmem:[%s49 + $0x28] sm:$0xff]
    %v458 = vld [vmem:[%s49 + $0x30] sm:$0xff]
    %v459 = vld [vmem:[%s49 + $0x38] sm:$0xff]
    %v460 = vld [vmem:[%s49 + $0x40] sm:$0xff]
    %v461 = vld [vmem:[%s49 + $0x48] sm:$0xff]
    %v462 = vld [vmem:[%s49 + $0x50] sm:$0xff]
    %v463 = vld [vmem:[%s49 + $0x58] sm:$0xff]
    %v464 = vld [vmem:[%s49 + $0x60] sm:$0xff]
    %v465 = vld [vmem:[%s49 + $0x68] sm:$0xff]
    %v466 = vld [vmem:[%s49 + $0x70] sm:$0xff]
    %v467 = vld [vmem:[%s49 + $0x78] sm:$0xff]
    %v468 = vld [vmem:[%s49 + $0x80] sm:$0xff]
    %v469 = vld [vmem:[%s49 + $0x88] sm:$0xff]
    %v470 = vld [vmem:[%s49 + $0x90] sm:$0xff]
    %v471 = vld [vmem:[%s49 + $0x98] sm:$0xff]
    %v472 = vld [vmem:[%s49 + $0xa0] sm:$0xff]
    %v473 = vld [vmem:[%s49 + $0xa8] sm:$0xff]
    %v474 = vld [vmem:[%s49 + $0xb0] sm:$0xff]
    %v475 = vld [vmem:[%s49 + $0xb8] sm:$0xff]
    %v476 = vld [vmem:[%s49 + $0xc0] sm:$0xff]
    %v477 = vld [vmem:[%s49 + $0xc8] sm:$0xff]
    %v478 = vld [vmem:[%s49 + $0xd0] sm:$0xff]
    %v479 = vld [vmem:[%s49 + $0xd8] sm:$0xff]
    %v480 = vld [vmem:[%s49 + $0xe0] sm:$0xff]
    %v481 = vld [vmem:[%s49 + $0xe8] sm:$0xff]
    %v482 = vld [vmem:[%s49 + $0xf0] sm:$0xff]
    %v483 = vld [vmem:[%s49 + $0xf8] sm:$0xff]
    %s484 = scalar_lea.vmem [#allocation8], 1
    %v485 = vld [vmem:[%s484] ss:$8 sm:$0x3]
    %v486 = vpack.c.bf16 %v448, %v448
    %v487 = vpack.c.bf16 %v449, %v449
    %v489 = vperm.slane %v485, 0
    %v490 = vperm.slane %v485, 1
    %v525 = vunpack.c.l.b16 %v452
    %v526 = vunpack.c.h.b16 %v452
    %v527 = vunpack.c.l.b16 %v453
    %v528 = vunpack.c.h.b16 %v453
    %v529 = vunpack.c.l.b16 %v454
    %v530 = vunpack.c.h.b16 %v454
    %v531 = vunpack.c.l.b16 %v455
    %v532 = vunpack.c.h.b16 %v455
    %v533 = vunpack.c.l.b16 %v456
    %v534 = vunpack.c.h.b16 %v456
    %v535 = vunpack.c.l.b16 %v457
    %v536 = vunpack.c.h.b16 %v457
    %v537 = vunpack.c.l.b16 %v458
    %v538 = vunpack.c.h.b16 %v458
    %v539 = vunpack.c.l.b16 %v459
    %v540 = vunpack.c.h.b16 %v459
    %v541 = vunpack.c.l.b16 %v460
    %v542 = vunpack.c.h.b16 %v460
    %v543 = vunpack.c.l.b16 %v461
    %v544 = vunpack.c.h.b16 %v461
    %v545 = vunpack.c.l.b16 %v462
    %v546 = vunpack.c.h.b16 %v462
    %v547 = vunpack.c.l.b16 %v463
    %v548 = vunpack.c.h.b16 %v463
    %v549 = vunpack.c.l.b16 %v464
    %v550 = vunpack.c.h.b16 %v464
    %v551 = vunpack.c.l.b16 %v465
    %v552 = vunpack.c.h.b16 %v465
    %v553 = vunpack.c.l.b16 %v466
    %v554 = vunpack.c.h.b16 %v466
    %v555 = vunpack.c.l.b16 %v467
    %v556 = vunpack.c.h.b16 %v467
    %v557 = vunpack.c.l.b16 %v468
    %v558 = vunpack.c.h.b16 %v468
    %v559 = vunpack.c.l.b16 %v469
    %v560 = vunpack.c.h.b16 %v469
    %v561 = vunpack.c.l.b16 %v470
    %v562 = vunpack.c.h.b16 %v470
    %v563 = vunpack.c.l.b16 %v471
    %v564 = vunpack.c.h.b16 %v471
    %v565 = vunpack.c.l.b16 %v472
    %v566 = vunpack.c.h.b16 %v472
    %v567 = vunpack.c.l.b16 %v473
    %v568 = vunpack.c.h.b16 %v473
    %v569 = vunpack.c.l.b16 %v474
    %v570 = vunpack.c.h.b16 %v474
    %v571 = vunpack.c.l.b16 %v475
    %v572 = vunpack.c.h.b16 %v475
    %v573 = vunpack.c.l.b16 %v476
    %v574 = vunpack.c.h.b16 %v476
    %v575 = vunpack.c.l.b16 %v477
    %v576 = vunpack.c.h.b16 %v477
    %v577 = vunpack.c.l.b16 %v478
    %v578 = vunpack.c.h.b16 %v478
    %v579 = vunpack.c.l.b16 %v479
    %v580 = vunpack.c.h.b16 %v479
    %v581 = vunpack.c.l.b16 %v480
    %v582 = vunpack.c.h.b16 %v480
    %v583 = vunpack.c.l.b16 %v481
    %v584 = vunpack.c.h.b16 %v481
    %v585 = vunpack.c.l.b16 %v482
    %v586 = vunpack.c.h.b16 %v482
    %v587 = vunpack.c.l.b16 %v483
    %v588 = vunpack.c.h.b16 %v483
    %v589 = vpack.c.b16 %v527, %v525
    %v590 = vpack.c.b16 %v528, %v526
    %v591 = vpack.c.b16 %v531, %v529
    %v592 = vpack.c.b16 %v532, %v530
    %v593 = vpack.c.b16 %v535, %v533
    %v594 = vpack.c.b16 %v536, %v534
    %v595 = vpack.c.b16 %v539, %v537
    %v596 = vpack.c.b16 %v540, %v538
    %v597 = vpack.c.b16 %v543, %v541
    %v598 = vpack.c.b16 %v544, %v542
    %v599 = vpack.c.b16 %v547, %v545
    %v600 = vpack.c.b16 %v548, %v546
    %v601 = vpack.c.b16 %v551, %v549
    %v602 = vpack.c.b16 %v552, %v550
    %v603 = vpack.c.b16 %v555, %v553
    %v604 = vpack.c.b16 %v556, %v554
    %v605 = vpack.c.b16 %v559, %v557
    %v606 = vpack.c.b16 %v560, %v558
    %v607 = vpack.c.b16 %v563, %v561
    %v608 = vpack.c.b16 %v564, %v562
    %v609 = vpack.c.b16 %v567, %v565
    %v610 = vpack.c.b16 %v568, %v566
    %v611 = vpack.c.b16 %v571, %v569
    %v612 = vpack.c.b16 %v572, %v570
    %v613 = vpack.c.b16 %v575, %v573
    %v614 = vpack.c.b16 %v576, %v574
    %v615 = vpack.c.b16 %v579, %v577
    %v616 = vpack.c.b16 %v580, %v578
    %v617 = vpack.c.b16 %v583, %v581
    %v618 = vpack.c.b16 %v584, %v582
    %v619 = vpack.c.b16 %v587, %v585
    %v620 = vpack.c.b16 %v588, %v586
    %653 = vmatpush.bf16.msra.mxu0 %v603
    %654 = vmatpush.bf16.msra.mxu0 %v601
    %655 = vmatpush.bf16.msra.mxu0 %v599
    %656 = vmatpush.bf16.msra.mxu0 %v597
    %657 = vmatpush.bf16.msra.mxu0 %v595
    %658 = vmatpush.bf16.msra.mxu0 %v593
    %659 = vmatpush.bf16.msra.mxu0 %v591
    %660 = vmatpush.bf16.msra.mxu0 %v589
    %661 = vmatmul.bf16.gmra.mxu0 %v486
    %v662 = vpop.f32.mrf.mxu0
    %v663 = vadd.f32 %v489, %v662
    %v664 = vpop.f32.mrf.mxu0
    %665 = vdwg.mxu0
    %666 = vmatpush.bf16.msra.mxu0 %v619
    %667 = vmatpush.bf16.msra.mxu0 %v617
    %668 = vmatpush.bf16.msra.mxu0 %v615
    %669 = vmatpush.bf16.msra.mxu0 %v613
    %670 = vmatpush.bf16.msra.mxu0 %v611
    %671 = vmatpush.bf16.msra.mxu0 %v609
    %672 = vmatpush.bf16.msra.mxu0 %v607
    %673 = vmatpush.bf16.msra.mxu0 %v605
    %674 = vmatmul.bf16.gmra.mxu0 %v487
    %v675 = vpop.f32.mrf.mxu0
    %v676 = vadd.f32 %v663, %v675
    %v677 = vpop.f32.mrf.mxu0
    %678 = vdwg.mxu0
    %679 = vmatpush.bf16.msra.mxu0 %v604
    %680 = vmatpush.bf16.msra.mxu0 %v602
    %681 = vmatpush.bf16.msra.mxu0 %v600
    %682 = vmatpush.bf16.msra.mxu0 %v598
    %683 = vmatpush.bf16.msra.mxu0 %v596
    %684 = vmatpush.bf16.msra.mxu0 %v594
    %685 = vmatpush.bf16.msra.mxu0 %v592
    %686 = vmatpush.bf16.msra.mxu0 %v590
    %687 = vmatmul.bf16.gmra.mxu0 %v486
    %v688 = vpop.f32.mrf.mxu0
    %v689 = vadd.f32 %v490, %v688
    %v690 = vpop.f32.mrf.mxu0
    %691 = vdwg.mxu0
    %692 = vmatpush.bf16.msra.mxu0 %v620
    %693 = vmatpush.bf16.msra.mxu0 %v618
    %694 = vmatpush.bf16.msra.mxu0 %v616
    %695 = vmatpush.bf16.msra.mxu0 %v614
    %696 = vmatpush.bf16.msra.mxu0 %v612
    %697 = vmatpush.bf16.msra.mxu0 %v610
    %698 = vmatpush.bf16.msra.mxu0 %v608
    %699 = vmatpush.bf16.msra.mxu0 %v606
    %700 = vmatmul.bf16.gmra.mxu0 %v487
    %v701 = vpop.f32.mrf.mxu0
    %v702 = vadd.f32 %v689, %v701
    %v703 = vpop.f32.mrf.mxu0
    %704 = vdwg.mxu0
    %v705 = vmax.f32 %v676, 0.0
    %v706 = vmax.f32 %v702, 0.0
    %s707 = sshll.u32 %s193, 4
    %708 = dma.done %s66, %s707
    %v709 = vld [vmem:[%s65] sm:$0xff]
    %v710 = vld [vmem:[%s65 + $0x8] sm:$0xff]
    %v711 = vld [vmem:[%s65 + $0x10] sm:$0xff]
    %v712 = vld [vmem:[%s65 + $0x18] sm:$0xff]
    %v713 = vld [vmem:[%s65 + $0x20] sm:$0xff]
    %v714 = vld [vmem:[%s65 + $0x28] sm:$0xff]
    %v715 = vld [vmem:[%s65 + $0x30] sm:$0xff]
    %v716 = vld [vmem:[%s65 + $0x38] sm:$0xff]
    %v717 = vld [vmem:[%s65 + $0x40] sm:$0xff]
    %v718 = vld [vmem:[%s65 + $0x48] sm:$0xff]
    %v719 = vld [vmem:[%s65 + $0x50] sm:$0xff]
    %v720 = vld [vmem:[%s65 + $0x58] sm:$0xff]
    %v721 = vld [vmem:[%s65 + $0x60] sm:$0xff]
    %v722 = vld [vmem:[%s65 + $0x68] sm:$0xff]
    %v723 = vld [vmem:[%s65 + $0x70] sm:$0xff]
    %v724 = vld [vmem:[%s65 + $0x78] sm:$0xff]
    %v725 = vld [vmem:[%s65 + $0x80] sm:$0xff]
    %v726 = vld [vmem:[%s65 + $0x88] sm:$0xff]
    %v727 = vld [vmem:[%s65 + $0x90] sm:$0xff]
    %v728 = vld [vmem:[%s65 + $0x98] sm:$0xff]
    %v729 = vld [vmem:[%s65 + $0xa0] sm:$0xff]
    %v730 = vld [vmem:[%s65 + $0xa8] sm:$0xff]
    %v731 = vld [vmem:[%s65 + $0xb0] sm:$0xff]
    %v732 = vld [vmem:[%s65 + $0xb8] sm:$0xff]
    %v733 = vld [vmem:[%s65 + $0xc0] sm:$0xff]
    %v734 = vld [vmem:[%s65 + $0xc8] sm:$0xff]
    %v735 = vld [vmem:[%s65 + $0xd0] sm:$0xff]
    %v736 = vld [vmem:[%s65 + $0xd8] sm:$0xff]
    %v737 = vld [vmem:[%s65 + $0xe0] sm:$0xff]
    %v738 = vld [vmem:[%s65 + $0xe8] sm:$0xff]
    %v739 = vld [vmem:[%s65 + $0xf0] sm:$0xff]
    %v740 = vld [vmem:[%s65 + $0xf8] sm:$0xff]
    %s741 = scalar_lea.vmem [#allocation8], 2
    %v742 = vld [vmem:[%s741] ss:$8 sm:$0x3]
    %v743 = vpack.c.bf16 %v705, %v705
    %v744 = vpack.c.bf16 %v706, %v706
    %v746 = vperm.slane %v742, 0
    %v747 = vperm.slane %v742, 1
    %v782 = vunpack.c.l.b16 %v709
    %v783 = vunpack.c.h.b16 %v709
    %v784 = vunpack.c.l.b16 %v710
    %v785 = vunpack.c.h.b16 %v710
    %v786 = vunpack.c.l.b16 %v711
    %v787 = vunpack.c.h.b16 %v711
    %v788 = vunpack.c.l.b16 %v712
    %v789 = vunpack.c.h.b16 %v712
    %v790 = vunpack.c.l.b16 %v713
    %v791 = vunpack.c.h.b16 %v713
    %v792 = vunpack.c.l.b16 %v714
    %v793 = vunpack.c.h.b16 %v714
    %v794 = vunpack.c.l.b16 %v715
    %v795 = vunpack.c.h.b16 %v715
    %v796 = vunpack.c.l.b16 %v716
    %v797 = vunpack.c.h.b16 %v716
    %v798 = vunpack.c.l.b16 %v717
    %v799 = vunpack.c.h.b16 %v717
    %v800 = vunpack.c.l.b16 %v718
    %v801 = vunpack.c.h.b16 %v718
    %v802 = vunpack.c.l.b16 %v719
    %v803 = vunpack.c.h.b16 %v719
    %v804 = vunpack.c.l.b16 %v720
    %v805 = vunpack.c.h.b16 %v720
    %v806 = vunpack.c.l.b16 %v721
    %v807 = vunpack.c.h.b16 %v721
    %v808 = vunpack.c.l.b16 %v722
    %v809 = vunpack.c.h.b16 %v722
    %v810 = vunpack.c.l.b16 %v723
    %v811 = vunpack.c.h.b16 %v723
    %v812 = vunpack.c.l.b16 %v724
    %v813 = vunpack.c.h.b16 %v724
    %v814 = vunpack.c.l.b16 %v725
    %v815 = vunpack.c.h.b16 %v725
    %v816 = vunpack.c.l.b16 %v726
    %v817 = vunpack.c.h.b16 %v726
    %v818 = vunpack.c.l.b16 %v727
    %v819 = vunpack.c.h.b16 %v727
    %v820 = vunpack.c.l.b16 %v728
    %v821 = vunpack.c.h.b16 %v728
    %v822 = vunpack.c.l.b16 %v729
    %v823 = vunpack.c.h.b16 %v729
    %v824 = vunpack.c.l.b16 %v730
    %v825 = vunpack.c.h.b16 %v730
    %v826 = vunpack.c.l.b16 %v731
    %v827 = vunpack.c.h.b16 %v731
    %v828 = vunpack.c.l.b16 %v732
    %v829 = vunpack.c.h.b16 %v732
    %v830 = vunpack.c.l.b16 %v733
    %v831 = vunpack.c.h.b16 %v733
    %v832 = vunpack.c.l.b16 %v734
    %v833 = vunpack.c.h.b16 %v734
    %v834 = vunpack.c.l.b16 %v735
    %v835 = vunpack.c.h.b16 %v735
    %v836 = vunpack.c.l.b16 %v736
    %v837 = vunpack.c.h.b16 %v736
    %v838 = vunpack.c.l.b16 %v737
    %v839 = vunpack.c.h.b16 %v737
    %v840 = vunpack.c.l.b16 %v738
    %v841 = vunpack.c.h.b16 %v738
    %v842 = vunpack.c.l.b16 %v739
    %v843 = vunpack.c.h.b16 %v739
    %v844 = vunpack.c.l.b16 %v740
    %v845 = vunpack.c.h.b16 %v740
    %v846 = vpack.c.b16 %v784, %v782
    %v847 = vpack.c.b16 %v785, %v783
    %v848 = vpack.c.b16 %v788, %v786
    %v849 = vpack.c.b16 %v789, %v787
    %v850 = vpack.c.b16 %v792, %v790
    %v851 = vpack.c.b16 %v793, %v791
    %v852 = vpack.c.b16 %v796, %v794
    %v853 = vpack.c.b16 %v797, %v795
    %v854 = vpack.c.b16 %v800, %v798
    %v855 = vpack.c.b16 %v801, %v799
    %v856 = vpack.c.b16 %v804, %v802
    %v857 = vpack.c.b16 %v805, %v803
    %v858 = vpack.c.b16 %v808, %v806
    %v859 = vpack.c.b16 %v809, %v807
    %v860 = vpack.c.b16 %v812, %v810
    %v861 = vpack.c.b16 %v813, %v811
    %v862 = vpack.c.b16 %v816, %v814
    %v863 = vpack.c.b16 %v817, %v815
    %v864 = vpack.c.b16 %v820, %v818
    %v865 = vpack.c.b16 %v821, %v819
    %v866 = vpack.c.b16 %v824, %v822
    %v867 = vpack.c.b16 %v825, %v823
    %v868 = vpack.c.b16 %v828, %v826
    %v869 = vpack.c.b16 %v829, %v827
    %v870 = vpack.c.b16 %v832, %v830
    %v871 = vpack.c.b16 %v833, %v831
    %v872 = vpack.c.b16 %v836, %v834
    %v873 = vpack.c.b16 %v837, %v835
    %v874 = vpack.c.b16 %v840, %v838
    %v875 = vpack.c.b16 %v841, %v839
    %v876 = vpack.c.b16 %v844, %v842
    %v877 = vpack.c.b16 %v845, %v843
    %910 = vmatpush.bf16.msra.mxu0 %v860
    %911 = vmatpush.bf16.msra.mxu0 %v858
    %912 = vmatpush.bf16.msra.mxu0 %v856
    %913 = vmatpush.bf16.msra.mxu0 %v854
    %914 = vmatpush.bf16.msra.mxu0 %v852
    %915 = vmatpush.bf16.msra.mxu0 %v850
    %916 = vmatpush.bf16.msra.mxu0 %v848
    %917 = vmatpush.bf16.msra.mxu0 %v846
    %918 = vmatmul.bf16.gmra.mxu0 %v743
    %v919 = vpop.f32.mrf.mxu0
    %v920 = vadd.f32 %v746, %v919
    %v921 = vpop.f32.mrf.mxu0
    %922 = vdwg.mxu0
    %923 = vmatpush.bf16.msra.mxu0 %v876
    %924 = vmatpush.bf16.msra.mxu0 %v874
    %925 = vmatpush.bf16.msra.mxu0 %v872
    %926 = vmatpush.bf16.msra.mxu0 %v870
    %927 = vmatpush.bf16.msra.mxu0 %v868
    %928 = vmatpush.bf16.msra.mxu0 %v866
    %929 = vmatpush.bf16.msra.mxu0 %v864
    %930 = vmatpush.bf16.msra.mxu0 %v862
    %931 = vmatmul.bf16.gmra.mxu0 %v744
    %v932 = vpop.f32.mrf.mxu0
    %v933 = vadd.f32 %v920, %v932
    %v934 = vpop.f32.mrf.mxu0
    %935 = vdwg.mxu0
    %936 = vmatpush.bf16.msra.mxu0 %v861
    %937 = vmatpush.bf16.msra.mxu0 %v859
    %938 = vmatpush.bf16.msra.mxu0 %v857
    %939 = vmatpush.bf16.msra.mxu0 %v855
    %940 = vmatpush.bf16.msra.mxu0 %v853
    %941 = vmatpush.bf16.msra.mxu0 %v851
    %942 = vmatpush.bf16.msra.mxu0 %v849
    %943 = vmatpush.bf16.msra.mxu0 %v847
    %944 = vmatmul.bf16.gmra.mxu0 %v743
    %v945 = vpop.f32.mrf.mxu0
    %v946 = vadd.f32 %v747, %v945
    %v947 = vpop.f32.mrf.mxu0
    %948 = vdwg.mxu0
    %949 = vmatpush.bf16.msra.mxu0 %v877
    %950 = vmatpush.bf16.msra.mxu0 %v875
    %951 = vmatpush.bf16.msra.mxu0 %v873
    %952 = vmatpush.bf16.msra.mxu0 %v871
    %953 = vmatpush.bf16.msra.mxu0 %v869
    %954 = vmatpush.bf16.msra.mxu0 %v867
    %955 = vmatpush.bf16.msra.mxu0 %v865
    %956 = vmatpush.bf16.msra.mxu0 %v863
    %957 = vmatmul.bf16.gmra.mxu0 %v744
    %v958 = vpop.f32.mrf.mxu0
    %v959 = vadd.f32 %v946, %v958
    %v960 = vpop.f32.mrf.mxu0
    %961 = vdwg.mxu0
    %v962 = vmax.f32 %v933, 0.0
    %v963 = vmax.f32 %v959, 0.0
    %s964 = smul.u32 %s192, 1
    %s965 = sshll.u32 %s964, 4
    %966 = dma.done %s80, %s965
    %v967 = vld [vmem:[#allocation3] sm:$0xf]
    %v968 = vld [vmem:[#allocation3 + $0x4] sm:$0xf]
    %v969 = vld [vmem:[#allocation3 + $0x8] sm:$0xf]
    %v970 = vld [vmem:[#allocation3 + $0xc] sm:$0xf]
    %v971 = vld [vmem:[#allocation3 + $0x10] sm:$0xf]
    %v972 = vld [vmem:[#allocation3 + $0x14] sm:$0xf]
    %v973 = vld [vmem:[#allocation3 + $0x18] sm:$0xf]
    %v974 = vld [vmem:[#allocation3 + $0x1c] sm:$0xf]
    %v975 = vld [vmem:[#allocation3 + $0x20] sm:$0xf]
    %v976 = vld [vmem:[#allocation3 + $0x24] sm:$0xf]
    %v977 = vld [vmem:[#allocation3 + $0x28] sm:$0xf]
    %v978 = vld [vmem:[#allocation3 + $0x2c] sm:$0xf]
    %v979 = vld [vmem:[#allocation3 + $0x30] sm:$0xf]
    %v980 = vld [vmem:[#allocation3 + $0x34] sm:$0xf]
    %v981 = vld [vmem:[#allocation3 + $0x38] sm:$0xf]
    %v982 = vld [vmem:[#allocation3 + $0x3c] sm:$0xf]
    %v983 = vld [vmem:[#allocation3 + $0x40] sm:$0xf]
    %v984 = vld [vmem:[#allocation3 + $0x44] sm:$0xf]
    %v985 = vld [vmem:[#allocation3 + $0x48] sm:$0xf]
    %v986 = vld [vmem:[#allocation3 + $0x4c] sm:$0xf]
    %v987 = vld [vmem:[#allocation3 + $0x50] sm:$0xf]
    %v988 = vld [vmem:[#allocation3 + $0x54] sm:$0xf]
    %v989 = vld [vmem:[#allocation3 + $0x58] sm:$0xf]
    %v990 = vld [vmem:[#allocation3 + $0x5c] sm:$0xf]
    %v991 = vld [vmem:[#allocation3 + $0x60] sm:$0xf]
    %v992 = vld [vmem:[#allocation3 + $0x64] sm:$0xf]
    %v993 = vld [vmem:[#allocation3 + $0x68] sm:$0xf]
    %v994 = vld [vmem:[#allocation3 + $0x6c] sm:$0xf]
    %v995 = vld [vmem:[#allocation3 + $0x70] sm:$0xf]
    %v996 = vld [vmem:[#allocation3 + $0x74] sm:$0xf]
    %v997 = vld [vmem:[#allocation3 + $0x78] sm:$0xf]
    %v998 = vld [vmem:[#allocation3 + $0x7c] sm:$0xf]
    %v999 = vld [vmem:[#allocation8 + $0x3] ss:$0 sm:$0xff]
    %v1000 = vpack.c.bf16 %v962, %v962
    %v1001 = vpack.c.bf16 %v963, %v963
    %v1034 = vunpack.c.l.b16 %v967
    %v1035 = vunpack.c.l.b16 %v968
    %v1036 = vunpack.c.l.b16 %v969
    %v1037 = vunpack.c.l.b16 %v970
    %v1038 = vunpack.c.l.b16 %v971
    %v1039 = vunpack.c.l.b16 %v972
    %v1040 = vunpack.c.l.b16 %v973
    %v1041 = vunpack.c.l.b16 %v974
    %v1042 = vunpack.c.l.b16 %v975
    %v1043 = vunpack.c.l.b16 %v976
    %v1044 = vunpack.c.l.b16 %v977
    %v1045 = vunpack.c.l.b16 %v978
    %v1046 = vunpack.c.l.b16 %v979
    %v1047 = vunpack.c.l.b16 %v980
    %v1048 = vunpack.c.l.b16 %v981
    %v1049 = vunpack.c.l.b16 %v982
    %v1050 = vunpack.c.l.b16 %v983
    %v1051 = vunpack.c.l.b16 %v984
    %v1052 = vunpack.c.l.b16 %v985
    %v1053 = vunpack.c.l.b16 %v986
    %v1054 = vunpack.c.l.b16 %v987
    %v1055 = vunpack.c.l.b16 %v988
    %v1056 = vunpack.c.l.b16 %v989
    %v1057 = vunpack.c.l.b16 %v990
    %v1058 = vunpack.c.l.b16 %v991
    %v1059 = vunpack.c.l.b16 %v992
    %v1060 = vunpack.c.l.b16 %v993
    %v1061 = vunpack.c.l.b16 %v994
    %v1062 = vunpack.c.l.b16 %v995
    %v1063 = vunpack.c.l.b16 %v996
    %v1064 = vunpack.c.l.b16 %v997
    %v1065 = vunpack.c.l.b16 %v998
    %v1066 = vpack.c.b16 %v1035, %v1034
    %v1067 = vpack.c.b16 %v1037, %v1036
    %v1068 = vpack.c.b16 %v1039, %v1038
    %v1069 = vpack.c.b16 %v1041, %v1040
    %v1070 = vpack.c.b16 %v1043, %v1042
    %v1071 = vpack.c.b16 %v1045, %v1044
    %v1072 = vpack.c.b16 %v1047, %v1046
    %v1073 = vpack.c.b16 %v1049, %v1048
    %v1074 = vpack.c.b16 %v1051, %v1050
    %v1075 = vpack.c.b16 %v1053, %v1052
    %v1076 = vpack.c.b16 %v1055, %v1054
    %v1077 = vpack.c.b16 %v1057, %v1056
    %v1078 = vpack.c.b16 %v1059, %v1058
    %v1079 = vpack.c.b16 %v1061, %v1060
    %v1080 = vpack.c.b16 %v1063, %v1062
    %v1081 = vpack.c.b16 %v1065, %v1064
    %1098 = vmatpush.bf16.msra.mxu0 %v1073
    %1099 = vmatpush.bf16.msra.mxu0 %v1072
    %1100 = vmatpush.bf16.msra.mxu0 %v1071
    %1101 = vmatpush.bf16.msra.mxu0 %v1070
    %1102 = vmatpush.bf16.msra.mxu0 %v1069
    %1103 = vmatpush.bf16.msra.mxu0 %v1068
    %1104 = vmatpush.bf16.msra.mxu0 %v1067
    %1105 = vmatpush.bf16.msra.mxu0 %v1066
    %1106 = vmatmul.bf16.gmra.mxu0 %v1000
    %v1107 = vpop.f32.mrf.mxu0
    %v1108 = vadd.f32 %v999, %v1107
    %v1109 = vpop.f32.mrf.mxu0
    %1110 = vdwg.mxu0
    %1111 = vmatpush.bf16.msra.mxu0 %v1081
    %1112 = vmatpush.bf16.msra.mxu0 %v1080
    %1113 = vmatpush.bf16.msra.mxu0 %v1079
    %1114 = vmatpush.bf16.msra.mxu0 %v1078
    %1115 = vmatpush.bf16.msra.mxu0 %v1077
    %1116 = vmatpush.bf16.msra.mxu0 %v1076
    %1117 = vmatpush.bf16.msra.mxu0 %v1075
    %1118 = vmatpush.bf16.msra.mxu0 %v1074
    %1119 = vmatmul.bf16.gmra.mxu0 %v1001
    %v1120 = vpop.f32.mrf.mxu0
    %v1121 = vadd.f32 %v1108, %v1120
    %v1122 = vpop.f32.mrf.mxu0
    %1123 = vdwg.mxu0
    %v1124 = vlaneseq
    %v1125 = vand.u32 %v1124, 127
    %vm1126 = vcmp.lt.s32.totalorder %v1125, 2
    %vm1127 = vcmp.ge.s32.totalorder %v1125, 8
    %vm1128 = vcmp.lt.s32.totalorder %v1125, 12
    %vm1129 = vmand %vm1127, %vm1128
    %vm1130 = vcmp.ge.s32.totalorder %v1125, 12
    %vm1131 = vcmp.lt.s32.totalorder %v1125, 16
    %vm1132 = vmand %vm1130, %vm1131
    %v1133 = vsel %vm1126, %v1121, -1e+30
    %1134 = vmax.xlane.f32.xlu0 %v1133
    %v1135 = vpop.xlane.xlu0 %1134
    %v1136 = vsub.f32 %v1133, %v1135
    %v1137 = vmul.f32 %v1136, 1.442695
    %v1138 = vpow.pop %v1137
    %1139 = vadd.xlane.f32.xlu0 %v1138
    %v1140 = vpop.xlane.xlu0 %1139
    %v1141 = vrcp.pop %v1140
    %v1142 = vmul.f32 %v1140, %v1141
    %v1143 = vsub.f32 1.0, %v1142
    %v1144 = vmul.f32 %v1141, %v1143
    %v1145 = vadd.f32 %v1141, %v1144
    %vm1146 = vweird.f32 %v1140
    %vm1147 = vweird.f32 %v1141
    %vm1148 = vmor %vm1146, %vm1147
    %v1149 = vsel %vm1148, %v1141, %v1145
    %v1150 = vand.u32 2147483647, %v1140
    %vm1151 = vcmp.eq.f32.partialorder %v1150, 8.507059e+37
    %v1152 = vand.u32 %v1140, 2147483648
    %v1153 = vor.u32 1.1754944e-38, %v1152
    %v1154 = vsel %vm1151, %v1153, %v1149
    %v1155 = vmul.f32 %v1138, %v1154
    %v1156 = vmax.f32 %v1121, 0.0
    %v1157 = vand.u32 2147483647, %v1121
    %v1158 = vsub.f32 0.0, %v1157
    %v1159 = vmul.f32 %v1158, 1.442695
    %v1160 = vpow.pop %v1159
    %v1161 = vadd.f32 %v1160, 1.0
    %v1162 = vlog2.pop %v1161
    %v1163 = vmul.f32 %v1162, 0.6931472
    %v1164 = vmul.f32 -0.5, %v1160
    %v1165 = vadd.f32 %v1164, 1.0
    %v1166 = vmul.f32 %v1165, %v1160
    %v1167 = vand.u32 2147483647, %v1160
    %vm1168 = vcmp.lt.f32.partialorder %v1167, 0.0004427343
    %v1169 = vsel %vm1168, %v1166, %v1163
    %v1170 = vadd.f32 %v1156, %v1169
    %v1171 = vsel %vm1132, %v1170, 0.0
    %v1172 = vsel %vm1129, %v1121, 0.0
    %1173 = vrot.lane.b32.xlu0 %v1171, 120
    %v1174 = vpop.permute.xlu0 %1173
    %1175 = vrot.lane.b32.xlu0 %v1172, 124
    %v1176 = vpop.permute.xlu0 %1175
    %v1177 = vld [vmem:[%s1] sm:$0xff]
    %v1178 = vrsqrt.pop %v1174
    %v1179 = vmul.f32 %v1178, %v1174
    %v1180 = vmul.f32 %v1179, %v1178
    %v1181 = vmul.f32 0.5, %v1180
    %v1182 = vsub.f32 1.5, %v1181
    %v1183 = vmul.f32 %v1178, %v1182
    %v1184 = vmul.f32 %v1174, %v1183
    %vm1185 = vcmp.eq.f32.partialorder %v1174, inf
    %v1186 = vsel %vm1185, %v1174, %v1184
    %vm1187 = vcmp.eq.f32.partialorder %v1174, 0.0
    %v1188 = vand.u32 %v1174, 2147483648
    %v1189 = vsel %vm1187, %v1188, %v1186
    %v1190 = vmul.f32 %v1177, %v1189
    %v1191 = vadd.f32 %v1190, %v1176
    %v1192 = vsel %vm1126, %v1121, 0.0
    %1193 = vrot.lane.b32.xlu0 %v1155, 2
    %v1194 = vpop.permute.xlu0 %1193
    %v1195 = vadd.f32 %v1192, %v1194
    %v1196 = vadd.f32 %v1195, %v1191
    %v1197 = vadd.f32 %v1196, %v1172
    %v1198 = vadd.f32 %v1197, %v1171
    %1199 = vst [vmem:[%s8] sm:$0xff] %v1198
    %s1200 = smul.u32 4, 16
    %s1201 = smul.u32 %s1200, 2
    %s1202 = sshll.u32 %s1201, 4
    %1203 = dma.done %s129, %s1202
    %v1204 = vld [vmem:[#allocation4] sm:$0xff]
    %v1205 = vld [vmem:[#allocation4 + $0x8] sm:$0xff]
    %v1206 = vld [vmem:[#allocation4 + $0x10] sm:$0xff]
    %v1207 = vld [vmem:[#allocation4 + $0x18] sm:$0xff]
    %v1208 = vld [vmem:[#allocation4 + $0x20] sm:$0xff]
    %v1209 = vld [vmem:[#allocation4 + $0x28] sm:$0xff]
    %v1210 = vld [vmem:[#allocation4 + $0x30] sm:$0xff]
    %v1211 = vld [vmem:[#allocation4 + $0x38] sm:$0xff]
    %v1212 = vld [vmem:[#allocation4 + $0x40] sm:$0xff]
    %v1213 = vld [vmem:[#allocation4 + $0x48] sm:$0xff]
    %v1214 = vld [vmem:[#allocation4 + $0x50] sm:$0xff]
    %v1215 = vld [vmem:[#allocation4 + $0x58] sm:$0xff]
    %v1216 = vld [vmem:[#allocation4 + $0x60] sm:$0xff]
    %v1217 = vld [vmem:[#allocation4 + $0x68] sm:$0xff]
    %v1218 = vld [vmem:[#allocation4 + $0x70] sm:$0xff]
    %v1219 = vld [vmem:[#allocation4 + $0x78] sm:$0xff]
    %s1220 = scalar_lea.vmem [#allocation8], 4
    %v1221 = vld [vmem:[%s1220] ss:$8 sm:$0x3]
    %v1222 = vpack.c.bf16 %v1191, %v1191
    %v1224 = vperm.slane %v1221, 0
    %v1225 = vperm.slane %v1221, 1
    %v1244 = vunpack.c.l.b16 %v1204
    %v1245 = vunpack.c.h.b16 %v1204
    %v1246 = vunpack.c.l.b16 %v1205
    %v1247 = vunpack.c.h.b16 %v1205
    %v1248 = vunpack.c.l.b16 %v1206
    %v1249 = vunpack.c.h.b16 %v1206
    %v1250 = vunpack.c.l.b16 %v1207
    %v1251 = vunpack.c.h.b16 %v1207
    %v1252 = vunpack.c.l.b16 %v1208
    %v1253 = vunpack.c.h.b16 %v1208
    %v1254 = vunpack.c.l.b16 %v1209
    %v1255 = vunpack.c.h.b16 %v1209
    %v1256 = vunpack.c.l.b16 %v1210
    %v1257 = vunpack.c.h.b16 %v1210
    %v1258 = vunpack.c.l.b16 %v1211
    %v1259 = vunpack.c.h.b16 %v1211
    %v1260 = vunpack.c.l.b16 %v1212
    %v1261 = vunpack.c.h.b16 %v1212
    %v1262 = vunpack.c.l.b16 %v1213
    %v1263 = vunpack.c.h.b16 %v1213
    %v1264 = vunpack.c.l.b16 %v1214
    %v1265 = vunpack.c.h.b16 %v1214
    %v1266 = vunpack.c.l.b16 %v1215
    %v1267 = vunpack.c.h.b16 %v1215
    %v1268 = vunpack.c.l.b16 %v1216
    %v1269 = vunpack.c.h.b16 %v1216
    %v1270 = vunpack.c.l.b16 %v1217
    %v1271 = vunpack.c.h.b16 %v1217
    %v1272 = vunpack.c.l.b16 %v1218
    %v1273 = vunpack.c.h.b16 %v1218
    %v1274 = vunpack.c.l.b16 %v1219
    %v1275 = vunpack.c.h.b16 %v1219
    %v1276 = vpack.c.b16 %v1246, %v1244
    %v1277 = vpack.c.b16 %v1247, %v1245
    %v1278 = vpack.c.b16 %v1250, %v1248
    %v1279 = vpack.c.b16 %v1251, %v1249
    %v1280 = vpack.c.b16 %v1254, %v1252
    %v1281 = vpack.c.b16 %v1255, %v1253
    %v1282 = vpack.c.b16 %v1258, %v1256
    %v1283 = vpack.c.b16 %v1259, %v1257
    %v1284 = vpack.c.b16 %v1262, %v1260
    %v1285 = vpack.c.b16 %v1263, %v1261
    %v1286 = vpack.c.b16 %v1266, %v1264
    %v1287 = vpack.c.b16 %v1267, %v1265
    %v1288 = vpack.c.b16 %v1270, %v1268
    %v1289 = vpack.c.b16 %v1271, %v1269
    %v1290 = vpack.c.b16 %v1274, %v1272
    %v1291 = vpack.c.b16 %v1275, %v1273
    %1308 = vmatpush.bf16.msra.mxu0 %v1290
    %1309 = vmatpush.bf16.msra.mxu0 %v1288
    %1310 = vmatpush.bf16.msra.mxu0 %v1286
    %1311 = vmatpush.bf16.msra.mxu0 %v1284
    %1312 = vmatpush.bf16.msra.mxu0 %v1282
    %1313 = vmatpush.bf16.msra.mxu0 %v1280
    %1314 = vmatpush.bf16.msra.mxu0 %v1278
    %1315 = vmatpush.bf16.msra.mxu0 %v1276
    %1316 = vmatmul.bf16.gmra.mxu0 %v1222
    %v1317 = vpop.f32.mrf.mxu0
    %v1318 = vadd.f32 %v1224, %v1317
    %v1319 = vpop.f32.mrf.mxu0
    %1320 = vdwg.mxu0
    %1321 = vmatpush.bf16.msra.mxu0 %v1291
    %1322 = vmatpush.bf16.msra.mxu0 %v1289
    %1323 = vmatpush.bf16.msra.mxu0 %v1287
    %1324 = vmatpush.bf16.msra.mxu0 %v1285
    %1325 = vmatpush.bf16.msra.mxu0 %v1283
    %1326 = vmatpush.bf16.msra.mxu0 %v1281
    %1327 = vmatpush.bf16.msra.mxu0 %v1279
    %1328 = vmatpush.bf16.msra.mxu0 %v1277
    %1329 = vmatmul.bf16.gmra.mxu0 %v1222
    %v1330 = vpop.f32.mrf.mxu0
    %v1331 = vadd.f32 %v1225, %v1330
    %v1332 = vpop.f32.mrf.mxu0
    %1333 = vdwg.mxu0
    %v1334 = vtanh.pop %v1318
    %v1335 = vtanh.pop %v1331
    %s1336 = smul.u32 %s1200, 1
    %s1337 = sshll.u32 %s1336, 4
    %1338 = dma.done %s143, %s1337
    %v1339 = vld [vmem:[#allocation8 + $0x5] ss:$0 sm:$0xff]
    %v1340 = vld [vmem:[#allocation5] sm:$0xf]
    %v1341 = vld [vmem:[#allocation5 + $0x4] sm:$0xf]
    %v1342 = vld [vmem:[#allocation5 + $0x8] sm:$0xf]
    %v1343 = vld [vmem:[#allocation5 + $0xc] sm:$0xf]
    %v1344 = vld [vmem:[#allocation5 + $0x10] sm:$0xf]
    %v1345 = vld [vmem:[#allocation5 + $0x14] sm:$0xf]
    %v1346 = vld [vmem:[#allocation5 + $0x18] sm:$0xf]
    %v1347 = vld [vmem:[#allocation5 + $0x1c] sm:$0xf]
    %v1348 = vld [vmem:[#allocation5 + $0x20] sm:$0xf]
    %v1349 = vld [vmem:[#allocation5 + $0x24] sm:$0xf]
    %v1350 = vld [vmem:[#allocation5 + $0x28] sm:$0xf]
    %v1351 = vld [vmem:[#allocation5 + $0x2c] sm:$0xf]
    %v1352 = vld [vmem:[#allocation5 + $0x30] sm:$0xf]
    %v1353 = vld [vmem:[#allocation5 + $0x34] sm:$0xf]
    %v1354 = vld [vmem:[#allocation5 + $0x38] sm:$0xf]
    %v1355 = vld [vmem:[#allocation5 + $0x3c] sm:$0xf]
    %v1356 = vpack.c.bf16 %v1334, %v1334
    %v1373 = vunpack.c.l.b16 %v1340
    %v1374 = vunpack.c.l.b16 %v1341
    %v1375 = vunpack.c.l.b16 %v1342
    %v1376 = vunpack.c.l.b16 %v1343
    %v1377 = vunpack.c.l.b16 %v1344
    %v1378 = vunpack.c.l.b16 %v1345
    %v1379 = vunpack.c.l.b16 %v1346
    %v1380 = vunpack.c.l.b16 %v1347
    %v1381 = vunpack.c.l.b16 %v1348
    %v1382 = vunpack.c.l.b16 %v1349
    %v1383 = vunpack.c.l.b16 %v1350
    %v1384 = vunpack.c.l.b16 %v1351
    %v1385 = vunpack.c.l.b16 %v1352
    %v1386 = vunpack.c.l.b16 %v1353
    %v1387 = vunpack.c.l.b16 %v1354
    %v1388 = vunpack.c.l.b16 %v1355
    %v1389 = vpack.c.b16 %v1374, %v1373
    %v1390 = vpack.c.b16 %v1376, %v1375
    %v1391 = vpack.c.b16 %v1378, %v1377
    %v1392 = vpack.c.b16 %v1380, %v1379
    %v1393 = vpack.c.b16 %v1382, %v1381
    %v1394 = vpack.c.b16 %v1384, %v1383
    %v1395 = vpack.c.b16 %v1386, %v1385
    %v1396 = vpack.c.b16 %v1388, %v1387
    %1405 = vmatpush.bf16.msra.mxu0 %v1396
    %1406 = vmatpush.bf16.msra.mxu0 %v1395
    %1407 = vmatpush.bf16.msra.mxu0 %v1394
    %1408 = vmatpush.bf16.msra.mxu0 %v1393
    %1409 = vmatpush.bf16.msra.mxu0 %v1392
    %1410 = vmatpush.bf16.msra.mxu0 %v1391
    %1411 = vmatpush.bf16.msra.mxu0 %v1390
    %1412 = vmatpush.bf16.msra.mxu0 %v1389
    %1413 = vmatmul.bf16.gmra.mxu0 %v1356
    %v1414 = vpop.f32.mrf.mxu0
    %v1415 = vadd.f32 %v1339, %v1414
    %v1416 = vpop.f32.mrf.mxu0
    %1417 = vdwg.mxu0
    %v1418 = vtanh.pop %v1415
    %v1419 = vpack.c.bf16 %v1335, %v1335
    %1420 = vmatpush.bf16.msra.mxu0 %v1396
    %1421 = vmatpush.bf16.msra.mxu0 %v1395
    %1422 = vmatpush.bf16.msra.mxu0 %v1394
    %1423 = vmatpush.bf16.msra.mxu0 %v1393
    %1424 = vmatpush.bf16.msra.mxu0 %v1392
    %1425 = vmatpush.bf16.msra.mxu0 %v1391
    %1426 = vmatpush.bf16.msra.mxu0 %v1390
    %1427 = vmatpush.bf16.msra.mxu0 %v1389
    %1428 = vmatmul.bf16.gmra.mxu0 %v1419
    %v1429 = vpop.f32.mrf.mxu0
    %v1430 = vadd.f32 %v1339, %v1429
    %v1431 = vpop.f32.mrf.mxu0
    %1432 = vdwg.mxu0
    %v1433 = vtanh.pop %v1430
    %s1434 = sshll.u32 %s1201, 4
    %1435 = dma.done %s176, %s1434
    %s1436 = scalar_lea.vmem [#allocation8], 6
    %v1437 = vld [vmem:[%s1436] ss:$8 sm:$0x3]
    %v1438 = vld [vmem:[#allocation6] sm:$0xff]
    %v1439 = vld [vmem:[#allocation6 + $0x8] sm:$0xff]
    %v1440 = vld [vmem:[#allocation6 + $0x10] sm:$0xff]
    %v1441 = vld [vmem:[#allocation6 + $0x18] sm:$0xff]
    %v1442 = vld [vmem:[#allocation6 + $0x20] sm:$0xff]
    %v1443 = vld [vmem:[#allocation6 + $0x28] sm:$0xff]
    %v1444 = vld [vmem:[#allocation6 + $0x30] sm:$0xff]
    %v1445 = vld [vmem:[#allocation6 + $0x38] sm:$0xff]
    %v1446 = vld [vmem:[#allocation6 + $0x40] sm:$0xff]
    %v1447 = vld [vmem:[#allocation6 + $0x48] sm:$0xff]
    %v1448 = vld [vmem:[#allocation6 + $0x50] sm:$0xff]
    %v1449 = vld [vmem:[#allocation6 + $0x58] sm:$0xff]
    %v1450 = vld [vmem:[#allocation6 + $0x60] sm:$0xff]
    %v1451 = vld [vmem:[#allocation6 + $0x68] sm:$0xff]
    %v1452 = vld [vmem:[#allocation6 + $0x70] sm:$0xff]
    %v1453 = vld [vmem:[#allocation6 + $0x78] sm:$0xff]
    %v1454 = vpack.c.bf16 %v1418, %v1418
    %v1456 = vperm.slane %v1437, 0
    %v1457 = vperm.slane %v1437, 1
    %v1476 = vunpack.c.l.b16 %v1438
    %v1477 = vunpack.c.h.b16 %v1438
    %v1478 = vunpack.c.l.b16 %v1439
    %v1479 = vunpack.c.h.b16 %v1439
    %v1480 = vunpack.c.l.b16 %v1440
    %v1481 = vunpack.c.h.b16 %v1440
    %v1482 = vunpack.c.l.b16 %v1441
    %v1483 = vunpack.c.h.b16 %v1441
    %v1484 = vunpack.c.l.b16 %v1442
    %v1485 = vunpack.c.h.b16 %v1442
    %v1486 = vunpack.c.l.b16 %v1443
    %v1487 = vunpack.c.h.b16 %v1443
    %v1488 = vunpack.c.l.b16 %v1444
    %v1489 = vunpack.c.h.b16 %v1444
    %v1490 = vunpack.c.l.b16 %v1445
    %v1491 = vunpack.c.h.b16 %v1445
    %v1492 = vunpack.c.l.b16 %v1446
    %v1493 = vunpack.c.h.b16 %v1446
    %v1494 = vunpack.c.l.b16 %v1447
    %v1495 = vunpack.c.h.b16 %v1447
    %v1496 = vunpack.c.l.b16 %v1448
    %v1497 = vunpack.c.h.b16 %v1448
    %v1498 = vunpack.c.l.b16 %v1449
    %v1499 = vunpack.c.h.b16 %v1449
    %v1500 = vunpack.c.l.b16 %v1450
    %v1501 = vunpack.c.h.b16 %v1450
    %v1502 = vunpack.c.l.b16 %v1451
    %v1503 = vunpack.c.h.b16 %v1451
    %v1504 = vunpack.c.l.b16 %v1452
    %v1505 = vunpack.c.h.b16 %v1452
    %v1506 = vunpack.c.l.b16 %v1453
    %v1507 = vunpack.c.h.b16 %v1453
    %v1508 = vpack.c.b16 %v1478, %v1476
    %v1509 = vpack.c.b16 %v1479, %v1477
    %v1510 = vpack.c.b16 %v1482, %v1480
    %v1511 = vpack.c.b16 %v1483, %v1481
    %v1512 = vpack.c.b16 %v1486, %v1484
    %v1513 = vpack.c.b16 %v1487, %v1485
    %v1514 = vpack.c.b16 %v1490, %v1488
    %v1515 = vpack.c.b16 %v1491, %v1489
    %v1516 = vpack.c.b16 %v1494, %v1492
    %v1517 = vpack.c.b16 %v1495, %v1493
    %v1518 = vpack.c.b16 %v1498, %v1496
    %v1519 = vpack.c.b16 %v1499, %v1497
    %v1520 = vpack.c.b16 %v1502, %v1500
    %v1521 = vpack.c.b16 %v1503, %v1501
    %v1522 = vpack.c.b16 %v1506, %v1504
    %v1523 = vpack.c.b16 %v1507, %v1505
    %1540 = vmatpush.bf16.msra.mxu0 %v1522
    %1541 = vmatpush.bf16.msra.mxu0 %v1520
    %1542 = vmatpush.bf16.msra.mxu0 %v1518
    %1543 = vmatpush.bf16.msra.mxu0 %v1516
    %1544 = vmatpush.bf16.msra.mxu0 %v1514
    %1545 = vmatpush.bf16.msra.mxu0 %v1512
    %1546 = vmatpush.bf16.msra.mxu0 %v1510
    %1547 = vmatpush.bf16.msra.mxu0 %v1508
    %1548 = vmatmul.bf16.gmra.mxu0 %v1454
    %v1549 = vpop.f32.mrf.mxu0
    %v1550 = vadd.f32 %v1456, %v1549
    %v1551 = vpop.f32.mrf.mxu0
    %1552 = vdwg.mxu0
    %1553 = vmatpush.bf16.msra.mxu0 %v1523
    %1554 = vmatpush.bf16.msra.mxu0 %v1521
    %1555 = vmatpush.bf16.msra.mxu0 %v1519
    %1556 = vmatpush.bf16.msra.mxu0 %v1517
    %1557 = vmatpush.bf16.msra.mxu0 %v1515
    %1558 = vmatpush.bf16.msra.mxu0 %v1513
    %1559 = vmatpush.bf16.msra.mxu0 %v1511
    %1560 = vmatpush.bf16.msra.mxu0 %v1509
    %1561 = vmatmul.bf16.gmra.mxu0 %v1454
    %v1562 = vpop.f32.mrf.mxu0
    %v1563 = vadd.f32 %v1457, %v1562
    %v1564 = vpop.f32.mrf.mxu0
    %1565 = vdwg.mxu0
    %v1566 = vtanh.pop %v1550
    %v1567 = vtanh.pop %v1563
    %1568 = vst [vmem:[%s9] sm:$0xff] %v1566
    %1569 = vst [vmem:[%s9 + $0x8] sm:$0xff] %v1567
    %v1570 = vld [vmem:[#allocation6] sm:$0xff]
    %v1571 = vld [vmem:[#allocation6 + $0x8] sm:$0xff]
    %v1572 = vld [vmem:[#allocation6 + $0x10] sm:$0xff]
    %v1573 = vld [vmem:[#allocation6 + $0x18] sm:$0xff]
    %v1574 = vld [vmem:[#allocation6 + $0x20] sm:$0xff]
    %v1575 = vld [vmem:[#allocation6 + $0x28] sm:$0xff]
    %v1576 = vld [vmem:[#allocation6 + $0x30] sm:$0xff]
    %v1577 = vld [vmem:[#allocation6 + $0x38] sm:$0xff]
    %v1578 = vld [vmem:[#allocation6 + $0x40] sm:$0xff]
    %v1579 = vld [vmem:[#allocation6 + $0x48] sm:$0xff]
    %v1580 = vld [vmem:[#allocation6 + $0x50] sm:$0xff]
    %v1581 = vld [vmem:[#allocation6 + $0x58] sm:$0xff]
    %v1582 = vld [vmem:[#allocation6 + $0x60] sm:$0xff]
    %v1583 = vld [vmem:[#allocation6 + $0x68] sm:$0xff]
    %v1584 = vld [vmem:[#allocation6 + $0x70] sm:$0xff]
    %v1585 = vld [vmem:[#allocation6 + $0x78] sm:$0xff]
    %v1586 = vpack.c.bf16 %v1433, %v1433
    %v1603 = vunpack.c.l.b16 %v1570
    %v1604 = vunpack.c.h.b16 %v1570
    %v1605 = vunpack.c.l.b16 %v1571
    %v1606 = vunpack.c.h.b16 %v1571
    %v1607 = vunpack.c.l.b16 %v1572
    %v1608 = vunpack.c.h.b16 %v1572
    %v1609 = vunpack.c.l.b16 %v1573
    %v1610 = vunpack.c.h.b16 %v1573
    %v1611 = vunpack.c.l.b16 %v1574
    %v1612 = vunpack.c.h.b16 %v1574
    %v1613 = vunpack.c.l.b16 %v1575
    %v1614 = vunpack.c.h.b16 %v1575
    %v1615 = vunpack.c.l.b16 %v1576
    %v1616 = vunpack.c.h.b16 %v1576
    %v1617 = vunpack.c.l.b16 %v1577
    %v1618 = vunpack.c.h.b16 %v1577
    %v1619 = vunpack.c.l.b16 %v1578
    %v1620 = vunpack.c.h.b16 %v1578
    %v1621 = vunpack.c.l.b16 %v1579
    %v1622 = vunpack.c.h.b16 %v1579
    %v1623 = vunpack.c.l.b16 %v1580
    %v1624 = vunpack.c.h.b16 %v1580
    %v1625 = vunpack.c.l.b16 %v1581
    %v1626 = vunpack.c.h.b16 %v1581
    %v1627 = vunpack.c.l.b16 %v1582
    %v1628 = vunpack.c.h.b16 %v1582
    %v1629 = vunpack.c.l.b16 %v1583
    %v1630 = vunpack.c.h.b16 %v1583
    %v1631 = vunpack.c.l.b16 %v1584
    %v1632 = vunpack.c.h.b16 %v1584
    %v1633 = vunpack.c.l.b16 %v1585
    %v1634 = vunpack.c.h.b16 %v1585
    %v1635 = vpack.c.b16 %v1605, %v1603
    %v1636 = vpack.c.b16 %v1606, %v1604
    %v1637 = vpack.c.b16 %v1609, %v1607
    %v1638 = vpack.c.b16 %v1610, %v1608
    %v1639 = vpack.c.b16 %v1613, %v1611
    %v1640 = vpack.c.b16 %v1614, %v1612
    %v1641 = vpack.c.b16 %v1617, %v1615
    %v1642 = vpack.c.b16 %v1618, %v1616
    %v1643 = vpack.c.b16 %v1621, %v1619
    %v1644 = vpack.c.b16 %v1622, %v1620
    %v1645 = vpack.c.b16 %v1625, %v1623
    %v1646 = vpack.c.b16 %v1626, %v1624
    %v1647 = vpack.c.b16 %v1629, %v1627
    %v1648 = vpack.c.b16 %v1630, %v1628
    %v1649 = vpack.c.b16 %v1633, %v1631
    %v1650 = vpack.c.b16 %v1634, %v1632
    %1667 = vmatpush.bf16.msra.mxu0 %v1649
    %1668 = vmatpush.bf16.msra.mxu0 %v1647
    %1669 = vmatpush.bf16.msra.mxu0 %v1645
    %1670 = vmatpush.bf16.msra.mxu0 %v1643
    %1671 = vmatpush.bf16.msra.mxu0 %v1641
    %1672 = vmatpush.bf16.msra.mxu0 %v1639
    %1673 = vmatpush.bf16.msra.mxu0 %v1637
    %1674 = vmatpush.bf16.msra.mxu0 %v1635
    %1675 = vmatmul.bf16.gmra.mxu0 %v1586
    %v1676 = vpop.f32.mrf.mxu0
    %v1677 = vadd.f32 %v1456, %v1676
    %v1678 = vpop.f32.mrf.mxu0
    %1679 = vdwg.mxu0
    %1680 = vmatpush.bf16.msra.mxu0 %v1650
    %1681 = vmatpush.bf16.msra.mxu0 %v1648
    %1682 = vmatpush.bf16.msra.mxu0 %v1646
    %1683 = vmatpush.bf16.msra.mxu0 %v1644
    %1684 = vmatpush.bf16.msra.mxu0 %v1642
    %1685 = vmatpush.bf16.msra.mxu0 %v1640
    %1686 = vmatpush.bf16.msra.mxu0 %v1638
    %1687 = vmatpush.bf16.msra.mxu0 %v1636
    %1688 = vmatmul.bf16.gmra.mxu0 %v1586
    %v1689 = vpop.f32.mrf.mxu0
    %v1690 = vadd.f32 %v1457, %v1689
    %v1691 = vpop.f32.mrf.mxu0
    %1692 = vdwg.mxu0
    %v1693 = vtanh.pop %v1677
    %v1694 = vtanh.pop %v1690
    %1695 = vst [vmem:[%s9 + $0x10] sm:$0xff] %v1693
    %1696 = vst [vmem:[%s9 + $0x18] sm:$0xff] %v1694
    // Predicated region
    $region76: #{gmvae_forward.1} parent=1 // pred_check
      _
    $region77: #{gmvae_forward.1} parent=1 // pred_check_branch
      %1698 = sbr.rel (0) target = $region79
    $region78: #{gmvae_forward.1} parent=1 // pred_region
      _
    $region79: #{gmvae_forward.1} parent=1 // pred_fallthru
      _
    // Predicated region
    $region80: #{gmvae_forward.1} parent=1 // pred_check
      _
    $region81: #{gmvae_forward.1} parent=1 // pred_check_branch
      %1700 = sbr.rel (0) target = $region83
    $region82: #{gmvae_forward.1} parent=1 // pred_region
      _
    $region83: #{gmvae_forward.1} parent=1 // pred_fallthru
      _
    // Predicated region
    $region84: #{gmvae_forward.1} parent=1 // pred_check
      _
    $region85: #{gmvae_forward.1} parent=1 // pred_check_branch
      %1702 = sbr.rel (0) target = $region87
    $region86: #{gmvae_forward.1} parent=1 // pred_region
      _
    $region87: #{gmvae_forward.1} parent=1 // pred_fallthru
      _
    // Predicated region
    $region88: #{gmvae_forward.1} parent=1 // pred_check
      _
    $region89: #{gmvae_forward.1} parent=1 // pred_check_branch
      %1704 = sbr.rel (0) target = $region91
    $region90: #{gmvae_forward.1} parent=1 // pred_region
      _
    $region91: #{gmvae_forward.1} parent=1 // pred_fallthru
      _
    %1705 = vsyncpa [#allocation9], 1
  %1706 = vsyncmov [#allocation7]
  %s1707 = vpop.sfrf %1706
  %p1708 = scmp.eq.s32.totalorder %s1707, 0
  %p1709 = pneg %p1708
  %1711 = shalt.err (%p1709)
  %s1712 = scalar_lea.sflag [#allocation7], 1
  %1713 = vsyncmov %s1712
  %s1714 = vpop.sfrf %1713
  %p1715 = scmp.eq.s32.totalorder %s1714, 0
  %p1716 = pneg %p1715
  %1718 = shalt.err (%p1716)
  %s1719 = scalar_lea.sflag [#allocation7], 2
  %1720 = vsyncmov %s1719
  %s1721 = vpop.sfrf %1720
  %p1722 = scmp.eq.s32.totalorder %s1721, 0
  %p1723 = pneg %p1722
  %1725 = shalt.err (%p1723)
  %s1726 = scalar_lea.sflag [#allocation7], 3
  %1727 = vsyncmov %s1726
  %s1728 = vpop.sfrf %1727
  %p1729 = scmp.eq.s32.totalorder %s1728, 0
  %p1730 = pneg %p1729
  %1732 = shalt.err (%p1730)
  %s1733 = scalar_lea.sflag [#allocation7], 4
  %1734 = vsyncmov %s1733
  %s1735 = vpop.sfrf %1734
  %p1736 = scmp.eq.s32.totalorder %s1735, 0
  %p1737 = pneg %p1736
  %1739 = shalt.err (%p1737)
  %s1740 = scalar_lea.sflag [#allocation7], 5
  %1741 = vsyncmov %s1740
  %s1742 = vpop.sfrf %1741
  %p1743 = scmp.eq.s32.totalorder %s1742, 0
  %p1744 = pneg %p1743
  %1746 = shalt.err (%p1744)
  %s1747 = scalar_lea.sflag [#allocation7], 6
  %1748 = vsyncmov %s1747
  %s1749 = vpop.sfrf %1748
  %p1750 = scmp.eq.s32.totalorder %s1749, 0
  %p1751 = pneg %p1750
  %1753 = shalt.err (%p1751)

</llo_original>
